<compile_context>
chip_gen: v7x
topology: tpu7x:2x2x1
jax: 0.10.0
libtpu: 0.0.40
codegen_flags: <defaults>
</compile_context>

<pallas_src>
import functools

import jax
import jax.numpy as jnp
from jax import lax
from jax.experimental import pallas as pl
from jax.experimental.pallas import tpu as pltpu

NEG_SLOPE = 0.01      # nn.LeakyReLU default
BN_EPS = 1e-5         # nn.BatchNorm default
MASK_NEG = -1e30      # bias for padded codebook logits (exp underflows to 0)


# ----------------------------------------------------------------------------
# Fused Pallas kernel: conv1 -> conv2 -> NCHW flatten -> FC -> fused heads.
# One grid step per branch; the whole batch is processed per step.
# ----------------------------------------------------------------------------
def fused_branch_kernel(x_ref, w1_ref, b1_ref, w2_ref, b2_ref,
                        fw_ref, fb_ref, hw_ref, hb_ref, out_ref,
                        *, B, H, W, cin, cout, ks, pad, n_reg, lmax):
    ho1 = H + 2 * pad - ks + 1
    wo1 = W + 2 * pad - ks + 1
    ho2 = ho1 + 2 * pad - ks + 1
    wo2 = wo1 + 2 * pad - ks + 1

    def pad_spatial(t, p):
        # t: (B, h, w, c) NHWC -> zero pad h and w by p on each side, in-kernel
        # (concatenate with zeros; no separate XLA pad op / HBM trip).
        if p == 0:
            return t
        b_, h_, w_, c_ = t.shape
        zw = jnp.zeros((b_, h_, p, c_), t.dtype)
        t = jnp.concatenate([zw, t, zw], axis=2)
        zh = jnp.zeros((b_, p, w_ + 2 * p, c_), t.dtype)
        return jnp.concatenate([zh, t, zh], axis=1)

    def conv_bn_lrelu(t, wmat, bias, ho, wo):
        # t: (B, hp, wp, c_in) zero-padded NHWC input.
        # Single MXU matmul over contraction K = ks*ks*c_in (im2col).
        c_in = t.shape[3]
        cols = []
        for kh in range(ks):
            for kw in range(ks):
                cols.append(
                    t[:, kh:kh + ho, kw:kw + wo, :].reshape(B * ho * wo, c_in))
        patches = jnp.concatenate(cols, axis=1)          # (B*ho*wo, ks*ks*c_in)
        y = jnp.dot(patches, wmat, preferred_element_type=jnp.float32) + bias
        return jnp.where(y >= 0.0, y, NEG_SLOPE * y)     # (B*ho*wo, cout)

    x = x_ref[0].reshape(B, H, W, cin)                   # (B, H, W, cin) NHWC

    h1 = conv_bn_lrelu(pad_spatial(x, pad), w1_ref[0], b1_ref[0], ho1, wo1)
    h1 = h1.reshape(B, ho1, wo1, cout)
    h2 = conv_bn_lrelu(pad_spatial(h1, pad), w2_ref[0], b2_ref[0], ho2, wo2)
    # h2: (B*ho2*wo2, cout), row index = (b, i, j)

    # Flatten in PyTorch NCHW order: flat[b, c*HW + s] = h2[b*HW + s, c].
    hw_sp = ho2 * wo2
    h2t = jnp.transpose(h2)                              # (cout, B*HW)
    chans = []
    for c in range(cout):
        rows_b = [h2t[c:c + 1, b * hw_sp:(b + 1) * hw_sp] for b in range(B)]
        chans.append(jnp.concatenate(rows_b, axis=0))    # (B, HW)
    flat = jnp.concatenate(chans, axis=1)                # (B, cout*HW)

    # FC (+ folded BatchNorm1d) + LeakyReLU.
    h = jnp.dot(flat, fw_ref[0], preferred_element_type=jnp.float32) + fb_ref[0]
    h = jnp.where(h >= 0.0, h, NEG_SLOPE * h)            # (B, n_hidden)

    # Fused heads: [R | I | C] in one matmul.
    y = jnp.dot(h, hw_ref[0], preferred_element_type=jnp.float32) + hb_ref[0]

    # Softmax over the codebook section (padded columns carry a -1e30 bias).
    logits = y[:, 2 * n_reg:]
    m = jnp.max(logits, axis=-1, keepdims=True)
    e = jnp.exp(logits - m)
    probs = e / jnp.sum(e, axis=-1, keepdims=True)

    y = jnp.concatenate([y[:, :2 * n_reg], probs], axis=1)
    out_ref[...] = y.reshape(1, B, 2 * n_reg + lmax).astype(out_ref.dtype)


# ----------------------------------------------------------------------------
# Forward pass: one pallas_call for the whole 4-branch network.
# ----------------------------------------------------------------------------
def net_forward(cfg, params, x1, x2, x3, x4):
    n_in, cout = cfg["n_in"], cfg["out_channel"]
    ks, pad = cfg["kernel_s"], cfg["padding"]
    U, Ass = cfg["U"], cfg["Ass"]
    nh, n_reg = cfg["n_hidden"], cfg["n_out_Reg"]
    lmax = max(cfg["Codebook_len"])
    head_w = 2 * n_reg + lmax
    n_br = 4
    B = x1.shape[0]

    # NCHW -> NHWC, stacked on a leading branch axis; 4-D per-branch blocks.
    x_all = jnp.stack([x1, x2, x3, x4], axis=0)          # (4, B, cin, U, Ass)
    x_all = jnp.transpose(x_all, (0, 1, 3, 4, 2))        # (4, B, U, Ass, cin)
    x_all = x_all.reshape(n_br, B * U, Ass, n_in)

    k1 = ks * ks * n_in
    k2 = ks * ks * cout
    nn_in_fc = params["fw"].shape[1]

    kernel = functools.partial(
        fused_branch_kernel, B=B, H=U, W=Ass, cin=n_in, cout=cout, ks=ks,
        pad=pad, n_reg=n_reg, lmax=lmax)

    out = pl.pallas_call(
        kernel,
        out_shape=jax.ShapeDtypeStruct((n_br, B, head_w), jnp.float32),
        grid=(n_br,),
        in_specs=[
            pl.BlockSpec((1, B * U, Ass, n_in), lambda i: (i, 0, 0, 0)),
            pl.BlockSpec((1, k1, cout), lambda i: (i, 0, 0)),
            pl.BlockSpec((1, 1, cout), lambda i: (i, 0, 0)),
            pl.BlockSpec((1, k2, cout), lambda i: (i, 0, 0)),
            pl.BlockSpec((1, 1, cout), lambda i: (i, 0, 0)),
            pl.BlockSpec((1, nn_in_fc, nh), lambda i: (i, 0, 0)),
            pl.BlockSpec((1, 1, nh), lambda i: (i, 0, 0)),
            pl.BlockSpec((1, nh, head_w), lambda i: (i, 0, 0)),
            pl.BlockSpec((1, 1, head_w), lambda i: (i, 0, 0)),
        ],
        out_specs=pl.BlockSpec((1, B, head_w), lambda i: (i, 0, 0)),
        compiler_params=pltpu.CompilerParams(
            dimension_semantics=("parallel",)),   # v7x: branches across 2 TCs
    )(x_all, params["w1"], params["b1"], params["w2"], params["b2"],
      params["fw"], params["fb"], params["hw"], params["hb"])

    # Final per-output re-arrangement (tiny, one-time XLA glue).
    outR = jnp.transpose(out[:, :, :n_reg], (1, 0, 2)).reshape(B, n_br * n_reg)
    outI = jnp.transpose(out[:, :, n_reg:2 * n_reg], (1, 0, 2)).reshape(B, n_br * n_reg)
    outC = tuple(out[i, :, 2 * n_reg:2 * n_reg + cfg["Codebook_len"][i]]
                 for i in range(n_br))
    return (outR, outI) + outC


# ----------------------------------------------------------------------------
# Parameters: synthetic PyTorch-layout params, then fold/convert/stack.
# ----------------------------------------------------------------------------
def init_raw_params(key, cfg):
    """PyTorch layouts: conv OIHW, linear (out, in), BatchNorm running stats."""
    n_in, cout, ks = cfg["n_in"], cfg["out_channel"], cfg["kernel_s"]
    nh, n_reg, nn_in_fc = cfg["n_hidden"], cfg["n_out_Reg"], cfg["nn_in_fc"]
    keys = iter(jax.random.split(key, 512))

    def nrm(shape, scale=0.1):
        return scale * jax.random.normal(next(keys), shape, jnp.float32)

    def bn(num):
        return dict(gamma=1.0 + nrm((num,)), beta=nrm((num,)),
                    mean=nrm((num,)), var=1.0 + jnp.abs(nrm((num,))))

    branches = []
    for bi in range(4):
        L = cfg["Codebook_len"][bi]
        branches.append(dict(
            conv1_w=nrm((cout, n_in, ks, ks)), conv1_b=nrm((cout,)), bn1=bn(cout),
            conv2_w=nrm((cout, cout, ks, ks)), conv2_b=nrm((cout,)), bn2=bn(cout),
            fc_w=nrm((nh, nn_in_fc)), fc_b=nrm((nh,)), bnf=bn(nh),
            wR=nrm((n_reg, nh)), bR=nrm((n_reg,)),
            wI=nrm((n_reg, nh)), bI=nrm((n_reg,)),
            wC=nrm((L, nh)), bC=nrm((L,)),
        ))
    return branches


def fold_and_stack(raw, cfg):
    """Fold eval-mode BatchNorm into conv/FC weights, convert PyTorch layouts
    into the kernel's matmul layouts, fuse head weights, stack over branches."""
    lmax = max(cfg["Codebook_len"])

    def bn_fold(bn):
        sc = bn["gamma"] / jnp.sqrt(bn["var"] + BN_EPS)
        sh = bn["beta"] - bn["mean"] * sc
        return sc, sh

    def conv_fold(w_oihw, b, bn):
        # OIHW (co, ci, kh, kw) -> (kh*kw*ci, co); row order (kh, kw, ci)
        # matches the kernel's im2col column order.  BN affine folded in.
        sc, sh = bn_fold(bn)
        wmat = jnp.transpose(w_oihw, (2, 3, 1, 0)).reshape(-1, w_oihw.shape[0])
        return wmat * sc[None, :], (sc * b + sh)[None, :]

    w1s, b1s, w2s, b2s, fws, fbs, hws, hbs = [], [], [], [], [], [], [], []
    for p in raw:
        w1, b1 = conv_fold(p["conv1_w"], p["conv1_b"], p["bn1"])
        w2, b2 = conv_fold(p["conv2_w"], p["conv2_b"], p["bn2"])
        fsc, fsh = bn_fold(p["bnf"])
        fw = p["fc_w"].T * fsc[None, :]                   # (nn_in_fc, n_hidden)
        fb = (fsc * p["fc_b"] + fsh)[None, :]
        L = p["wC"].shape[0]
        wc = jnp.zeros((p["wC"].shape[1], lmax), jnp.float32).at[:, :L].set(p["wC"].T)
        bc = jnp.full((lmax,), MASK_NEG, jnp.float32).at[:L].set(p["bC"])
        hw = jnp.concatenate([p["wR"].T, p["wI"].T, wc], axis=1)   # (nh, 2nr+lmax)
        hb = jnp.concatenate([p["bR"], p["bI"], bc], axis=0)[None, :]
        w1s.append(w1); b1s.append(b1); w2s.append(w2); b2s.append(b2)
        fws.append(fw); fbs.append(fb); hws.append(hw); hbs.append(hb)

    st = lambda xs: jnp.stack(xs, axis=0)
    return dict(w1=st(w1s), b1=st(b1s), w2=st(w2s), b2=st(b2s),
                fw=st(fws), fb=st(fbs), hw=st(hws), hb=st(hbs))


# ----------------------------------------------------------------------------
# Pure-JAX reference (mirrors the PyTorch module op-by-op, eval mode).
# ----------------------------------------------------------------------------
def reference_forward(raw, cfg, xs):
    pad = cfg["padding"]

    def mm(a, b):
        return jnp.dot(a, b, precision=lax.Precision.HIGHEST)

    def bn_sc_sh(bn):
        sc = bn["gamma"] / jnp.sqrt(bn["var"] + BN_EPS)
        return sc, bn["beta"] - bn["mean"] * sc

    def lrelu(y):
        return jnp.where(y >= 0.0, y, NEG_SLOPE * y)

    def conv(x, w, b):
        y = lax.conv_general_dilated(
            x, w, window_strides=(1, 1), padding=((pad, pad), (pad, pad)),
            dimension_numbers=("NCHW", "OIHW", "NCHW"),
            precision=lax.Precision.HIGHEST)
        return y + b[None, :, None, None]

    rs, is_, cs = [], [], []
    for x, p in zip(xs, raw):
        sc1, sh1 = bn_sc_sh(p["bn1"])
        sc2, sh2 = bn_sc_sh(p["bn2"])
        scf, shf = bn_sc_sh(p["bnf"])
        o = lrelu(conv(x, p["conv1_w"], p["conv1_b"]) * sc1[None, :, None, None]
                  + sh1[None, :, None, None])
        o = lrelu(conv(o, p["conv2_w"], p["conv2_b"]) * sc2[None, :, None, None]
                  + sh2[None, :, None, None])
        flat = o.reshape(o.shape[0], -1)                  # NCHW flatten
        h = lrelu((mm(flat, p["fc_w"].T) + p["fc_b"]) * scf[None, :] + shf[None, :])
        rs.append(mm(h, p["wR"].T) + p["bR"])
        is_.append(mm(h, p["wI"].T) + p["bI"])
        cs.append(jax.nn.softmax(mm(h, p["wC"].T) + p["bC"], axis=1))
    return (jnp.concatenate(rs, axis=1), jnp.concatenate(is_, axis=1)) + tuple(cs)


# ----------------------------------------------------------------------------
if __name__ == "__main__":
    cfg = dict(n_in=2, out_channel=4, kernel_s=3, padding=1, U=8, Ass=8,
               n_hidden=32, n_out_Reg=4, Codebook_len=(8, 8, 8, 8),
               p_dropout=0.5)
    x_new = cfg["U"] + 2 * cfg["padding"] - cfg["kernel_s"] + 1
    y_new = cfg["Ass"] + 2 * cfg["padding"] - cfg["kernel_s"] + 1
    x_new2 = x_new + 2 * cfg["padding"] - cfg["kernel_s"] + 1
    y_new2 = y_new + 2 * cfg["padding"] - cfg["kernel_s"] + 1
    cfg["nn_in_fc"] = cfg["out_channel"] * x_new2 * y_new2

    batch = 2
    key = jax.random.PRNGKey(0)
    kp, kx = jax.random.split(key)
    raw = init_raw_params(kp, cfg)
    params = fold_and_stack(raw, cfg)

    xkeys = jax.random.split(kx, 4)
    xs = tuple(jax.random.normal(xkeys[i],
                                 (batch, cfg["n_in"], cfg["U"], cfg["Ass"]),
                                 jnp.float32) for i in range(4))

    fwd = jax.jit(functools.partial(net_forward, cfg))
    outs = fwd(params, *xs)
    outs = jax.block_until_ready(outs)

    outR, outI, c1, c2, c3, c4 = outs
    assert outR.shape == (batch, 4 * cfg["n_out_Reg"])
    assert outI.shape == (batch, 4 * cfg["n_out_Reg"])
    for c, L in zip((c1, c2, c3, c4), cfg["Codebook_len"]):
        assert c.shape == (batch, L)
        assert bool(jnp.all(jnp.abs(jnp.sum(c, axis=1) - 1.0) < 1e-5))
    assert all(bool(jnp.all(jnp.isfinite(o))) for o in outs)

    # Cross-check the fused kernel against a pure-JAX reference built from the
    # raw (un-folded, PyTorch-layout) parameters.
    ref = reference_forward(raw, cfg, xs)
    for got, want in zip(outs, ref):
        assert got.shape == want.shape
        assert bool(jnp.allclose(got, want, atol=5e-3, rtol=5e-3)), \
            float(jnp.max(jnp.abs(got - want)))

    print("KERNEL_OK")
</pallas_src>

<mosaic_0001>
module attributes {stable_mosaic.version = 11 : i64} {
  func.func @fused_branch_kernel(%arg0: i32, %arg1: memref<1x16x8x2xf32, #tpu.memory_space<vmem>>, %arg2: memref<1x18x4xf32, #tpu.memory_space<vmem>>, %arg3: memref<1x1x4xf32, #tpu.memory_space<vmem>>, %arg4: memref<1x36x4xf32, #tpu.memory_space<vmem>>, %arg5: memref<1x1x4xf32, #tpu.memory_space<vmem>>, %arg6: memref<1x256x32xf32, #tpu.memory_space<vmem>>, %arg7: memref<1x1x32xf32, #tpu.memory_space<vmem>>, %arg8: memref<1x32x16xf32, #tpu.memory_space<vmem>>, %arg9: memref<1x1x16xf32, #tpu.memory_space<vmem>>, %arg10: memref<1x2x16xf32, #tpu.memory_space<vmem>>) attributes {dimension_semantics = [#tpu.dimension_semantics<parallel>], iteration_bounds = array<i64: 4>, scalar_prefetch = 0 : i64, scratch_operands = 0 : i64, tpu.core_type = #tpu.core_type<tc>, window_params = [{transform_indices = @transform_0, window_bounds = array<i64: 1, 16, 8, 2>}, {transform_indices = @transform_1, window_bounds = array<i64: 1, 18, 4>}, {transform_indices = @transform_2, window_bounds = array<i64: 1, 1, 4>}, {transform_indices = @transform_3, window_bounds = array<i64: 1, 36, 4>}, {transform_indices = @transform_4, window_bounds = array<i64: 1, 1, 4>}, {transform_indices = @transform_5, window_bounds = array<i64: 1, 256, 32>}, {transform_indices = @transform_6, window_bounds = array<i64: 1, 1, 32>}, {transform_indices = @transform_7, window_bounds = array<i64: 1, 32, 16>}, {transform_indices = @transform_8, window_bounds = array<i64: 1, 1, 16>}, {transform_indices = @transform_9, window_bounds = array<i64: 1, 2, 16>}]} {
    %c0 = arith.constant 0 : index
    %c0_0 = arith.constant 0 : index
    %c0_1 = arith.constant 0 : index
    %c0_2 = arith.constant 0 : index
    %0 = vector.load %arg1[%c0, %c0_0, %c0_1, %c0_2] : memref<1x16x8x2xf32, #tpu.memory_space<vmem>>, vector<1x16x8x2xf32>
    %1 = vector.shape_cast %0 : vector<1x16x8x2xf32> to vector<16x8x2xf32>
    %2 = vector.shape_cast %1 : vector<16x8x2xf32> to vector<2x8x8x2xf32>
    %cst = arith.constant 0.000000e+00 : f32
    %3 = vector.broadcast %cst : f32 to vector<2x8x1x2xf32>
    %4 = tpu.concatenate %3, %2, %3 in 2 : vector<2x8x1x2xf32>, vector<2x8x8x2xf32>, vector<2x8x1x2xf32> -> vector<2x8x10x2xf32>
    %cst_3 = arith.constant 0.000000e+00 : f32
    %5 = vector.broadcast %cst_3 : f32 to vector<2x1x10x2xf32>
    %6 = tpu.concatenate %5, %4, %5 in 1 : vector<2x1x10x2xf32>, vector<2x8x10x2xf32>, vector<2x1x10x2xf32> -> vector<2x10x10x2xf32>
    %c0_4 = arith.constant 0 : index
    %c0_5 = arith.constant 0 : index
    %c0_6 = arith.constant 0 : index
    %7 = vector.load %arg2[%c0_4, %c0_5, %c0_6] : memref<1x18x4xf32, #tpu.memory_space<vmem>>, vector<1x18x4xf32>
    %8 = vector.shape_cast %7 : vector<1x18x4xf32> to vector<18x4xf32>
    %c0_7 = arith.constant 0 : index
    %c0_8 = arith.constant 0 : index
    %c0_9 = arith.constant 0 : index
    %9 = vector.load %arg3[%c0_7, %c0_8, %c0_9] : memref<1x1x4xf32, #tpu.memory_space<vmem>>, vector<1x1x4xf32>
    %10 = vector.shape_cast %9 : vector<1x1x4xf32> to vector<1x4xf32>
    %11 = vector.extract_strided_slice %6 {offsets = [0, 0, 0, 0], sizes = [2, 8, 8, 2], strides = [1, 1, 1, 1]} : vector<2x10x10x2xf32> to vector<2x8x8x2xf32>
    %12 = vector.shape_cast %11 : vector<2x8x8x2xf32> to vector<128x2xf32>
    %13 = vector.extract_strided_slice %6 {offsets = [0, 0, 1, 0], sizes = [2, 8, 8, 2], strides = [1, 1, 1, 1]} : vector<2x10x10x2xf32> to vector<2x8x8x2xf32>
    %14 = vector.shape_cast %13 : vector<2x8x8x2xf32> to vector<128x2xf32>
    %15 = vector.extract_strided_slice %6 {offsets = [0, 0, 2, 0], sizes = [2, 8, 8, 2], strides = [1, 1, 1, 1]} : vector<2x10x10x2xf32> to vector<2x8x8x2xf32>
    %16 = vector.shape_cast %15 : vector<2x8x8x2xf32> to vector<128x2xf32>
    %17 = vector.extract_strided_slice %6 {offsets = [0, 1, 0, 0], sizes = [2, 8, 8, 2], strides = [1, 1, 1, 1]} : vector<2x10x10x2xf32> to vector<2x8x8x2xf32>
    %18 = vector.shape_cast %17 : vector<2x8x8x2xf32> to vector<128x2xf32>
    %19 = vector.extract_strided_slice %6 {offsets = [0, 1, 1, 0], sizes = [2, 8, 8, 2], strides = [1, 1, 1, 1]} : vector<2x10x10x2xf32> to vector<2x8x8x2xf32>
    %20 = vector.shape_cast %19 : vector<2x8x8x2xf32> to vector<128x2xf32>
    %21 = vector.extract_strided_slice %6 {offsets = [0, 1, 2, 0], sizes = [2, 8, 8, 2], strides = [1, 1, 1, 1]} : vector<2x10x10x2xf32> to vector<2x8x8x2xf32>
    %22 = vector.shape_cast %21 : vector<2x8x8x2xf32> to vector<128x2xf32>
    %23 = vector.extract_strided_slice %6 {offsets = [0, 2, 0, 0], sizes = [2, 8, 8, 2], strides = [1, 1, 1, 1]} : vector<2x10x10x2xf32> to vector<2x8x8x2xf32>
    %24 = vector.shape_cast %23 : vector<2x8x8x2xf32> to vector<128x2xf32>
    %25 = vector.extract_strided_slice %6 {offsets = [0, 2, 1, 0], sizes = [2, 8, 8, 2], strides = [1, 1, 1, 1]} : vector<2x10x10x2xf32> to vector<2x8x8x2xf32>
    %26 = vector.shape_cast %25 : vector<2x8x8x2xf32> to vector<128x2xf32>
    %27 = vector.extract_strided_slice %6 {offsets = [0, 2, 2, 0], sizes = [2, 8, 8, 2], strides = [1, 1, 1, 1]} : vector<2x10x10x2xf32> to vector<2x8x8x2xf32>
    %28 = vector.shape_cast %27 : vector<2x8x8x2xf32> to vector<128x2xf32>
    %29 = tpu.concatenate %12, %14, %16, %18, %20, %22, %24, %26, %28 in 1 : vector<128x2xf32>, vector<128x2xf32>, vector<128x2xf32>, vector<128x2xf32>, vector<128x2xf32>, vector<128x2xf32>, vector<128x2xf32>, vector<128x2xf32>, vector<128x2xf32> -> vector<128x18xf32>
    %cst_10 = arith.constant dense<0.000000e+00> : vector<128x4xf32>
    %30 = tpu.matmul %29, %8, %cst_10 {dimension_numbers = #tpu.dot_dimension_numbers<[1], [0], [0], [1], [0, 0, 1, 1], [], []>} : vector<128x18xf32>, vector<18x4xf32>, vector<128x4xf32> -> vector<128x4xf32>
    %31 = vector.broadcast %10 : vector<1x4xf32> to vector<128x4xf32>
    %32 = arith.addf %30, %31 : vector<128x4xf32>
    %cst_11 = arith.constant 0.000000e+00 : f32
    %33 = vector.broadcast %cst_11 : f32 to vector<128x4xf32>
    %34 = arith.cmpf oge, %32, %33 : vector<128x4xf32>
    %cst_12 = arith.constant 0.00999999977 : f32
    %35 = vector.broadcast %cst_12 : f32 to vector<128x4xf32>
    %36 = arith.mulf %35, %32 : vector<128x4xf32>
    %37 = arith.select %34, %32, %36 : vector<128x4xi1>, vector<128x4xf32>
    %38 = vector.shape_cast %37 : vector<128x4xf32> to vector<2x8x8x4xf32>
    %cst_13 = arith.constant 0.000000e+00 : f32
    %39 = vector.broadcast %cst_13 : f32 to vector<2x8x1x4xf32>
    %40 = tpu.concatenate %39, %38, %39 in 2 : vector<2x8x1x4xf32>, vector<2x8x8x4xf32>, vector<2x8x1x4xf32> -> vector<2x8x10x4xf32>
    %cst_14 = arith.constant 0.000000e+00 : f32
    %41 = vector.broadcast %cst_14 : f32 to vector<2x1x10x4xf32>
    %42 = tpu.concatenate %41, %40, %41 in 1 : vector<2x1x10x4xf32>, vector<2x8x10x4xf32>, vector<2x1x10x4xf32> -> vector<2x10x10x4xf32>
    %c0_15 = arith.constant 0 : index
    %c0_16 = arith.constant 0 : index
    %c0_17 = arith.constant 0 : index
    %43 = vector.load %arg4[%c0_15, %c0_16, %c0_17] : memref<1x36x4xf32, #tpu.memory_space<vmem>>, vector<1x36x4xf32>
    %44 = vector.shape_cast %43 : vector<1x36x4xf32> to vector<36x4xf32>
    %c0_18 = arith.constant 0 : index
    %c0_19 = arith.constant 0 : index
    %c0_20 = arith.constant 0 : index
    %45 = vector.load %arg5[%c0_18, %c0_19, %c0_20] : memref<1x1x4xf32, #tpu.memory_space<vmem>>, vector<1x1x4xf32>
    %46 = vector.shape_cast %45 : vector<1x1x4xf32> to vector<1x4xf32>
    %47 = vector.extract_strided_slice %42 {offsets = [0, 0, 0, 0], sizes = [2, 8, 8, 4], strides = [1, 1, 1, 1]} : vector<2x10x10x4xf32> to vector<2x8x8x4xf32>
    %48 = vector.shape_cast %47 : vector<2x8x8x4xf32> to vector<128x4xf32>
    %49 = vector.extract_strided_slice %42 {offsets = [0, 0, 1, 0], sizes = [2, 8, 8, 4], strides = [1, 1, 1, 1]} : vector<2x10x10x4xf32> to vector<2x8x8x4xf32>
    %50 = vector.shape_cast %49 : vector<2x8x8x4xf32> to vector<128x4xf32>
    %51 = vector.extract_strided_slice %42 {offsets = [0, 0, 2, 0], sizes = [2, 8, 8, 4], strides = [1, 1, 1, 1]} : vector<2x10x10x4xf32> to vector<2x8x8x4xf32>
    %52 = vector.shape_cast %51 : vector<2x8x8x4xf32> to vector<128x4xf32>
    %53 = vector.extract_strided_slice %42 {offsets = [0, 1, 0, 0], sizes = [2, 8, 8, 4], strides = [1, 1, 1, 1]} : vector<2x10x10x4xf32> to vector<2x8x8x4xf32>
    %54 = vector.shape_cast %53 : vector<2x8x8x4xf32> to vector<128x4xf32>
    %55 = vector.extract_strided_slice %42 {offsets = [0, 1, 1, 0], sizes = [2, 8, 8, 4], strides = [1, 1, 1, 1]} : vector<2x10x10x4xf32> to vector<2x8x8x4xf32>
    %56 = vector.shape_cast %55 : vector<2x8x8x4xf32> to vector<128x4xf32>
    %57 = vector.extract_strided_slice %42 {offsets = [0, 1, 2, 0], sizes = [2, 8, 8, 4], strides = [1, 1, 1, 1]} : vector<2x10x10x4xf32> to vector<2x8x8x4xf32>
    %58 = vector.shape_cast %57 : vector<2x8x8x4xf32> to vector<128x4xf32>
    %59 = vector.extract_strided_slice %42 {offsets = [0, 2, 0, 0], sizes = [2, 8, 8, 4], strides = [1, 1, 1, 1]} : vector<2x10x10x4xf32> to vector<2x8x8x4xf32>
    %60 = vector.shape_cast %59 : vector<2x8x8x4xf32> to vector<128x4xf32>
    %61 = vector.extract_strided_slice %42 {offsets = [0, 2, 1, 0], sizes = [2, 8, 8, 4], strides = [1, 1, 1, 1]} : vector<2x10x10x4xf32> to vector<2x8x8x4xf32>
    %62 = vector.shape_cast %61 : vector<2x8x8x4xf32> to vector<128x4xf32>
    %63 = vector.extract_strided_slice %42 {offsets = [0, 2, 2, 0], sizes = [2, 8, 8, 4], strides = [1, 1, 1, 1]} : vector<2x10x10x4xf32> to vector<2x8x8x4xf32>
    %64 = vector.shape_cast %63 : vector<2x8x8x4xf32> to vector<128x4xf32>
    %65 = tpu.concatenate %48, %50, %52, %54, %56, %58, %60, %62, %64 in 1 : vector<128x4xf32>, vector<128x4xf32>, vector<128x4xf32>, vector<128x4xf32>, vector<128x4xf32>, vector<128x4xf32>, vector<128x4xf32>, vector<128x4xf32>, vector<128x4xf32> -> vector<128x36xf32>
    %cst_21 = arith.constant dense<0.000000e+00> : vector<128x4xf32>
    %66 = tpu.matmul %65, %44, %cst_21 {dimension_numbers = #tpu.dot_dimension_numbers<[1], [0], [0], [1], [0, 0, 1, 1], [], []>} : vector<128x36xf32>, vector<36x4xf32>, vector<128x4xf32> -> vector<128x4xf32>
    %67 = vector.broadcast %46 : vector<1x4xf32> to vector<128x4xf32>
    %68 = arith.addf %66, %67 : vector<128x4xf32>
    %cst_22 = arith.constant 0.000000e+00 : f32
    %69 = vector.broadcast %cst_22 : f32 to vector<128x4xf32>
    %70 = arith.cmpf oge, %68, %69 : vector<128x4xf32>
    %cst_23 = arith.constant 0.00999999977 : f32
    %71 = vector.broadcast %cst_23 : f32 to vector<128x4xf32>
    %72 = arith.mulf %71, %68 : vector<128x4xf32>
    %73 = arith.select %70, %68, %72 : vector<128x4xi1>, vector<128x4xf32>
    %74 = tpu.transpose %73, [1, 0] : vector<128x4xf32> -> vector<4x128xf32>
    %75 = vector.extract_strided_slice %74 {offsets = [0, 0], sizes = [1, 64], strides = [1, 1]} : vector<4x128xf32> to vector<1x64xf32>
    %76 = vector.extract_strided_slice %74 {offsets = [0, 64], sizes = [1, 64], strides = [1, 1]} : vector<4x128xf32> to vector<1x64xf32>
    %77 = tpu.concatenate %75, %76 in 0 : vector<1x64xf32>, vector<1x64xf32> -> vector<2x64xf32>
    %78 = vector.extract_strided_slice %74 {offsets = [1, 0], sizes = [1, 64], strides = [1, 1]} : vector<4x128xf32> to vector<1x64xf32>
    %79 = vector.extract_strided_slice %74 {offsets = [1, 64], sizes = [1, 64], strides = [1, 1]} : vector<4x128xf32> to vector<1x64xf32>
    %80 = tpu.concatenate %78, %79 in 0 : vector<1x64xf32>, vector<1x64xf32> -> vector<2x64xf32>
    %81 = vector.extract_strided_slice %74 {offsets = [2, 0], sizes = [1, 64], strides = [1, 1]} : vector<4x128xf32> to vector<1x64xf32>
    %82 = vector.extract_strided_slice %74 {offsets = [2, 64], sizes = [1, 64], strides = [1, 1]} : vector<4x128xf32> to vector<1x64xf32>
    %83 = tpu.concatenate %81, %82 in 0 : vector<1x64xf32>, vector<1x64xf32> -> vector<2x64xf32>
    %84 = vector.extract_strided_slice %74 {offsets = [3, 0], sizes = [1, 64], strides = [1, 1]} : vector<4x128xf32> to vector<1x64xf32>
    %85 = vector.extract_strided_slice %74 {offsets = [3, 64], sizes = [1, 64], strides = [1, 1]} : vector<4x128xf32> to vector<1x64xf32>
    %86 = tpu.concatenate %84, %85 in 0 : vector<1x64xf32>, vector<1x64xf32> -> vector<2x64xf32>
    %87 = tpu.concatenate %77, %80, %83, %86 in 1 : vector<2x64xf32>, vector<2x64xf32>, vector<2x64xf32>, vector<2x64xf32> -> vector<2x256xf32>
    %c0_24 = arith.constant 0 : index
    %c0_25 = arith.constant 0 : index
    %c0_26 = arith.constant 0 : index
    %88 = vector.load %arg6[%c0_24, %c0_25, %c0_26] : memref<1x256x32xf32, #tpu.memory_space<vmem>>, vector<1x256x32xf32>
    %89 = vector.shape_cast %88 : vector<1x256x32xf32> to vector<256x32xf32>
    %cst_27 = arith.constant dense<0.000000e+00> : vector<2x32xf32>
    %90 = tpu.matmul %87, %89, %cst_27 {dimension_numbers = #tpu.dot_dimension_numbers<[1], [0], [0], [1], [0, 0, 1, 1], [], []>} : vector<2x256xf32>, vector<256x32xf32>, vector<2x32xf32> -> vector<2x32xf32>
    %c0_28 = arith.constant 0 : index
    %c0_29 = arith.constant 0 : index
    %c0_30 = arith.constant 0 : index
    %91 = vector.load %arg7[%c0_28, %c0_29, %c0_30] : memref<1x1x32xf32, #tpu.memory_space<vmem>>, vector<1x1x32xf32>
    %92 = vector.shape_cast %91 : vector<1x1x32xf32> to vector<1x32xf32>
    %93 = vector.broadcast %92 : vector<1x32xf32> to vector<2x32xf32>
    %94 = arith.addf %90, %93 : vector<2x32xf32>
    %cst_31 = arith.constant 0.000000e+00 : f32
    %95 = vector.broadcast %cst_31 : f32 to vector<2x32xf32>
    %96 = arith.cmpf oge, %94, %95 : vector<2x32xf32>
    %cst_32 = arith.constant 0.00999999977 : f32
    %97 = vector.broadcast %cst_32 : f32 to vector<2x32xf32>
    %98 = arith.mulf %97, %94 : vector<2x32xf32>
    %99 = arith.select %96, %94, %98 : vector<2x32xi1>, vector<2x32xf32>
    %c0_33 = arith.constant 0 : index
    %c0_34 = arith.constant 0 : index
    %c0_35 = arith.constant 0 : index
    %100 = vector.load %arg8[%c0_33, %c0_34, %c0_35] : memref<1x32x16xf32, #tpu.memory_space<vmem>>, vector<1x32x16xf32>
    %101 = vector.shape_cast %100 : vector<1x32x16xf32> to vector<32x16xf32>
    %cst_36 = arith.constant dense<0.000000e+00> : vector<2x16xf32>
    %102 = tpu.matmul %99, %101, %cst_36 {dimension_numbers = #tpu.dot_dimension_numbers<[1], [0], [0], [1], [0, 0, 1, 1], [], []>} : vector<2x32xf32>, vector<32x16xf32>, vector<2x16xf32> -> vector<2x16xf32>
    %c0_37 = arith.constant 0 : index
    %c0_38 = arith.constant 0 : index
    %c0_39 = arith.constant 0 : index
    %103 = vector.load %arg9[%c0_37, %c0_38, %c0_39] : memref<1x1x16xf32, #tpu.memory_space<vmem>>, vector<1x1x16xf32>
    %104 = vector.shape_cast %103 : vector<1x1x16xf32> to vector<1x16xf32>
    %105 = vector.broadcast %104 : vector<1x16xf32> to vector<2x16xf32>
    %106 = arith.addf %102, %105 : vector<2x16xf32>
    %107 = vector.extract_strided_slice %106 {offsets = [0, 8], sizes = [2, 8], strides = [1, 1]} : vector<2x16xf32> to vector<2x8xf32>
    %cst_40 = arith.constant dense<0xFF800000> : vector<2xf32>
    %108 = vector.multi_reduction <maximumf>, %107, %cst_40 [1] : vector<2x8xf32> to vector<2xf32>
    %109 = vector.shape_cast %108 : vector<2xf32> to vector<2x1xf32>
    %110 = vector.broadcast %109 : vector<2x1xf32> to vector<2x8xf32>
    %111 = arith.subf %107, %110 : vector<2x8xf32>
    %112 = math.exp %111 : vector<2x8xf32>
    %cst_41 = arith.constant dense<0.000000e+00> : vector<2xf32>
    %113 = vector.multi_reduction <add>, %112, %cst_41 [1] : vector<2x8xf32> to vector<2xf32>
    %114 = vector.shape_cast %113 : vector<2xf32> to vector<2x1xf32>
    %115 = vector.broadcast %114 : vector<2x1xf32> to vector<2x8xf32>
    %116 = arith.divf %112, %115 : vector<2x8xf32>
    %117 = vector.extract_strided_slice %106 {offsets = [0, 0], sizes = [2, 8], strides = [1, 1]} : vector<2x16xf32> to vector<2x8xf32>
    %118 = tpu.concatenate %117, %116 in 1 : vector<2x8xf32>, vector<2x8xf32> -> vector<2x16xf32>
    %119 = vector.shape_cast %118 : vector<2x16xf32> to vector<1x2x16xf32>
    %c0_42 = arith.constant 0 : index
    %c0_43 = arith.constant 0 : index
    %c0_44 = arith.constant 0 : index
    %120 = vector.load %arg10[%c0_42, %c0_43, %c0_44] : memref<1x2x16xf32, #tpu.memory_space<vmem>>, vector<1x2x16xf32>
    tpu.vector_store %arg10[%c0_42, %c0_43, %c0_44], %119 {strides = array<i32>} : memref<1x2x16xf32, #tpu.memory_space<vmem>>, vector<1x2x16xf32>,
    return
  }
  func.func @transform_0(%arg0: i32) -> (i32, i32, i32, i32) {
    %c0_i32 = arith.constant 0 : i32
    %c0_i32_0 = arith.constant 0 : i32
    %c0_i32_1 = arith.constant 0 : i32
    %c0_i32_2 = arith.constant 0 : i32
    return %arg0, %c0_i32, %c0_i32_0, %c0_i32_1 : i32, i32, i32, i32
  }
  func.func @transform_1(%arg0: i32) -> (i32, i32, i32) {
    %c0_i32 = arith.constant 0 : i32
    %c0_i32_0 = arith.constant 0 : i32
    %c0_i32_1 = arith.constant 0 : i32
    return %arg0, %c0_i32, %c0_i32_0 : i32, i32, i32
  }
  func.func @transform_2(%arg0: i32) -> (i32, i32, i32) {
    %c0_i32 = arith.constant 0 : i32
    %c0_i32_0 = arith.constant 0 : i32
    %c0_i32_1 = arith.constant 0 : i32
    return %arg0, %c0_i32, %c0_i32_0 : i32, i32, i32
  }
  func.func @transform_3(%arg0: i32) -> (i32, i32, i32) {
    %c0_i32 = arith.constant 0 : i32
    %c0_i32_0 = arith.constant 0 : i32
    %c0_i32_1 = arith.constant 0 : i32
    return %arg0, %c0_i32, %c0_i32_0 : i32, i32, i32
  }
  func.func @transform_4(%arg0: i32) -> (i32, i32, i32) {
    %c0_i32 = arith.constant 0 : i32
    %c0_i32_0 = arith.constant 0 : i32
    %c0_i32_1 = arith.constant 0 : i32
    return %arg0, %c0_i32, %c0_i32_0 : i32, i32, i32
  }
  func.func @transform_5(%arg0: i32) -> (i32, i32, i32) {
    %c0_i32 = arith.constant 0 : i32
    %c0_i32_0 = arith.constant 0 : i32
    %c0_i32_1 = arith.constant 0 : i32
    return %arg0, %c0_i32, %c0_i32_0 : i32, i32, i32
  }
  func.func @transform_6(%arg0: i32) -> (i32, i32, i32) {
    %c0_i32 = arith.constant 0 : i32
    %c0_i32_0 = arith.constant 0 : i32
    %c0_i32_1 = arith.constant 0 : i32
    return %arg0, %c0_i32, %c0_i32_0 : i32, i32, i32
  }
  func.func @transform_7(%arg0: i32) -> (i32, i32, i32) {
    %c0_i32 = arith.constant 0 : i32
    %c0_i32_0 = arith.constant 0 : i32
    %c0_i32_1 = arith.constant 0 : i32
    return %arg0, %c0_i32, %c0_i32_0 : i32, i32, i32
  }
  func.func @transform_8(%arg0: i32) -> (i32, i32, i32) {
    %c0_i32 = arith.constant 0 : i32
    %c0_i32_0 = arith.constant 0 : i32
    %c0_i32_1 = arith.constant 0 : i32
    return %arg0, %c0_i32, %c0_i32_0 : i32, i32, i32
  }
  func.func @transform_9(%arg0: i32) -> (i32, i32, i32) {
    %c0_i32 = arith.constant 0 : i32
    %c0_i32_0 = arith.constant 0 : i32
    %c0_i32_1 = arith.constant 0 : i32
    return %arg0, %c0_i32, %c0_i32_0 : i32, i32, i32
  }
}

</mosaic_0001>

<llo_original>
// kernel: net_forward.1
$region0: #{net_forward.1}
  #allocation0 [shape = 'u32[]', space=smem, size = 0x4, offset = 0x4, fixed_abs, tag = 'smem constant byte address 0x4 - core index']
  #allocation1 [shape = 'u32[144,128]{1,0:T(1,128)}', space=vmem, size = 0x12000, scoped, tag = 'internal scratch']
  %s0 = inlined_call_operand.vmem [shape: f32[4,16,8,2], index: 0, kind: input, shape index: {}]
  %s1 = inlined_call_operand.vmem [shape: f32[4,18,4], index: 1, kind: input, shape index: {}]
  %s2 = inlined_call_operand.vmem [shape: f32[4,1,4], index: 2, kind: input, shape index: {}]
  %s3 = inlined_call_operand.vmem [shape: f32[4,36,4], index: 3, kind: input, shape index: {}]
  %s4 = inlined_call_operand.vmem [shape: f32[4,1,4], index: 4, kind: input, shape index: {}]
  %s5 = inlined_call_operand.vmem [shape: f32[4,256,32], index: 5, kind: input, shape index: {}]
  %s6 = inlined_call_operand.vmem [shape: f32[4,1,32], index: 6, kind: input, shape index: {}]
  %s7 = inlined_call_operand.vmem [shape: f32[4,32,16], index: 7, kind: input, shape index: {}]
  %s8 = inlined_call_operand.vmem [shape: f32[4,1,16], index: 8, kind: input, shape index: {}]
  %s9 = inlined_call_operand.vmem [shape: f32[4,2,16], index: 9, kind: output, shape index: {}]
  %s10 = sld [smem:[#allocation0]]
  $region69: #{net_forward.1} parent=0
    _
  %s12 = ssub.s32 1, %s10
  %s13 = scalar_select 0, %s12, %s10
  loop: start=0, step=1, limit=6
  $region2: #{net_forward.1} parent=0 // loop_pre_header
    _
  $region3: #{net_forward.1} parent=0 // loop_header
    %s15 = sphi 0, %s19
    %p16 = scmp.ge.s32.totalorder %s15, 6
    %s25 = sphi 0, %s27
    %s28 = sphi 0, %s25
    %s29 = sphi 0, %s28
    %s45 = sphi 0, %s29
    %s51 = sphi 0, %s53
    %s54 = sphi 0, %s51
    %s55 = sphi 0, %s54
    %s71 = sphi 0, %s55
    %s77 = sphi 0, %s79
    %s80 = sphi 0, %s77
    %s81 = sphi 0, %s80
    %s97 = sphi 0, %s81
    %s103 = sphi 0, %s105
    %s106 = sphi 0, %s103
    %s107 = sphi 0, %s106
    %s123 = sphi 0, %s107
    %s129 = sphi 0, %s131
    %s132 = sphi 0, %s129
    %s133 = sphi 0, %s132
    %s149 = sphi 0, %s133
    %s155 = sphi 0, %s157
    %s158 = sphi 0, %s155
    %s159 = sphi 0, %s158
    %s175 = sphi 0, %s159
    %s181 = sphi 0, %s183
    %s184 = sphi 0, %s181
    %s185 = sphi 0, %s184
    %s201 = sphi 0, %s185
    %s207 = sphi 0, %s209
    %s210 = sphi 0, %s207
    %s211 = sphi 0, %s210
    %s227 = sphi 0, %s211
    %s233 = sphi 0, %s235
    %s236 = sphi 0, %s233
    %s237 = sphi 0, %s236
    %s253 = sphi 0, %s237
    %s259 = sphi 0, %s261
    %s262 = sphi 0, %s259
    %s263 = sphi 0, %s262
    %s279 = sphi 0, %s263
  $region4: #{net_forward.1} parent=0 // loop_header_branch
    %18 = sbr.rel (%p16) target = $region8
  $region5: #{net_forward.1} parent=0 // loop_body
    %s20 = ssub.s32 %s15, 1
    %s21 = ssub.s32 %s15, 2
    %s22 = sadd.s32 %s15, 1
    %s23 = ssub.s32 %s15, %s22
    %p24 = scmp.eq.s32.totalorder %s23, 0
    %s26 = sadd.s32 %s25, 1
    %s27 = scalar_select %p24, %s25, %s26
    %p30 = pneg %p24
    %p31 = scmp.eq.s32.totalorder %s15, 3
    %p32 = por %p30, %p31
    %p33 = scmp.ne.s32.totalorder %s25, %s28
    %p34 = scmp.eq.s32.totalorder %s15, 0
    %p35 = por %p33, %p34
    %p36 = scmp.ne.s32.totalorder %s25, %s28
    %p37 = scmp.eq.s32.totalorder %s20, 3
    %p38 = por %p36, %p37
    %p39 = scmp.ne.s32.totalorder %s28, %s29
    %p40 = scmp.eq.s32.totalorder %s20, 0
    %p41 = por %p39, %p40
    %p42 = scmp.ne.s32.totalorder %s28, %s29
    %p43 = scmp.eq.s32.totalorder %s21, 3
    %p44 = por %p42, %p43
    %p46 = scmp.ne.s32.totalorder %s29, %s45
    %p47 = scmp.eq.s32.totalorder %s21, 0
    %p48 = por %p46, %p47
    %s49 = ssub.s32 %s15, %s22
    %p50 = scmp.eq.s32.totalorder %s49, 0
    %s52 = sadd.s32 %s51, 1
    %s53 = scalar_select %p50, %s51, %s52
    %p56 = pneg %p50
    %p57 = scmp.eq.s32.totalorder %s15, 3
    %p58 = por %p56, %p57
    %p59 = scmp.ne.s32.totalorder %s51, %s54
    %p60 = scmp.eq.s32.totalorder %s15, 0
    %p61 = por %p59, %p60
    %p62 = scmp.ne.s32.totalorder %s51, %s54
    %p63 = scmp.eq.s32.totalorder %s20, 3
    %p64 = por %p62, %p63
    %p65 = scmp.ne.s32.totalorder %s54, %s55
    %p66 = scmp.eq.s32.totalorder %s20, 0
    %p67 = por %p65, %p66
    %p68 = scmp.ne.s32.totalorder %s54, %s55
    %p69 = scmp.eq.s32.totalorder %s21, 3
    %p70 = por %p68, %p69
    %p72 = scmp.ne.s32.totalorder %s55, %s71
    %p73 = scmp.eq.s32.totalorder %s21, 0
    %p74 = por %p72, %p73
    %s75 = ssub.s32 %s15, %s22
    %p76 = scmp.eq.s32.totalorder %s75, 0
    %s78 = sadd.s32 %s77, 1
    %s79 = scalar_select %p76, %s77, %s78
    %p82 = pneg %p76
    %p83 = scmp.eq.s32.totalorder %s15, 3
    %p84 = por %p82, %p83
    %p85 = scmp.ne.s32.totalorder %s77, %s80
    %p86 = scmp.eq.s32.totalorder %s15, 0
    %p87 = por %p85, %p86
    %p88 = scmp.ne.s32.totalorder %s77, %s80
    %p89 = scmp.eq.s32.totalorder %s20, 3
    %p90 = por %p88, %p89
    %p91 = scmp.ne.s32.totalorder %s80, %s81
    %p92 = scmp.eq.s32.totalorder %s20, 0
    %p93 = por %p91, %p92
    %p94 = scmp.ne.s32.totalorder %s80, %s81
    %p95 = scmp.eq.s32.totalorder %s21, 3
    %p96 = por %p94, %p95
    %p98 = scmp.ne.s32.totalorder %s81, %s97
    %p99 = scmp.eq.s32.totalorder %s21, 0
    %p100 = por %p98, %p99
    %s101 = ssub.s32 %s15, %s22
    %p102 = scmp.eq.s32.totalorder %s101, 0
    %s104 = sadd.s32 %s103, 1
    %s105 = scalar_select %p102, %s103, %s104
    %p108 = pneg %p102
    %p109 = scmp.eq.s32.totalorder %s15, 3
    %p110 = por %p108, %p109
    %p111 = scmp.ne.s32.totalorder %s103, %s106
    %p112 = scmp.eq.s32.totalorder %s15, 0
    %p113 = por %p111, %p112
    %p114 = scmp.ne.s32.totalorder %s103, %s106
    %p115 = scmp.eq.s32.totalorder %s20, 3
    %p116 = por %p114, %p115
    %p117 = scmp.ne.s32.totalorder %s106, %s107
    %p118 = scmp.eq.s32.totalorder %s20, 0
    %p119 = por %p117, %p118
    %p120 = scmp.ne.s32.totalorder %s106, %s107
    %p121 = scmp.eq.s32.totalorder %s21, 3
    %p122 = por %p120, %p121
    %p124 = scmp.ne.s32.totalorder %s107, %s123
    %p125 = scmp.eq.s32.totalorder %s21, 0
    %p126 = por %p124, %p125
    %s127 = ssub.s32 %s15, %s22
    %p128 = scmp.eq.s32.totalorder %s127, 0
    %s130 = sadd.s32 %s129, 1
    %s131 = scalar_select %p128, %s129, %s130
    %p134 = pneg %p128
    %p135 = scmp.eq.s32.totalorder %s15, 3
    %p136 = por %p134, %p135
    %p137 = scmp.ne.s32.totalorder %s129, %s132
    %p138 = scmp.eq.s32.totalorder %s15, 0
    %p139 = por %p137, %p138
    %p140 = scmp.ne.s32.totalorder %s129, %s132
    %p141 = scmp.eq.s32.totalorder %s20, 3
    %p142 = por %p140, %p141
    %p143 = scmp.ne.s32.totalorder %s132, %s133
    %p144 = scmp.eq.s32.totalorder %s20, 0
    %p145 = por %p143, %p144
    %p146 = scmp.ne.s32.totalorder %s132, %s133
    %p147 = scmp.eq.s32.totalorder %s21, 3
    %p148 = por %p146, %p147
    %p150 = scmp.ne.s32.totalorder %s133, %s149
    %p151 = scmp.eq.s32.totalorder %s21, 0
    %p152 = por %p150, %p151
    %s153 = ssub.s32 %s15, %s22
    %p154 = scmp.eq.s32.totalorder %s153, 0
    %s156 = sadd.s32 %s155, 1
    %s157 = scalar_select %p154, %s155, %s156
    %p160 = pneg %p154
    %p161 = scmp.eq.s32.totalorder %s15, 3
    %p162 = por %p160, %p161
    %p163 = scmp.ne.s32.totalorder %s155, %s158
    %p164 = scmp.eq.s32.totalorder %s15, 0
    %p165 = por %p163, %p164
    %p166 = scmp.ne.s32.totalorder %s155, %s158
    %p167 = scmp.eq.s32.totalorder %s20, 3
    %p168 = por %p166, %p167
    %p169 = scmp.ne.s32.totalorder %s158, %s159
    %p170 = scmp.eq.s32.totalorder %s20, 0
    %p171 = por %p169, %p170
    %p172 = scmp.ne.s32.totalorder %s158, %s159
    %p173 = scmp.eq.s32.totalorder %s21, 3
    %p174 = por %p172, %p173
    %p176 = scmp.ne.s32.totalorder %s159, %s175
    %p177 = scmp.eq.s32.totalorder %s21, 0
    %p178 = por %p176, %p177
    %s179 = ssub.s32 %s15, %s22
    %p180 = scmp.eq.s32.totalorder %s179, 0
    %s182 = sadd.s32 %s181, 1
    %s183 = scalar_select %p180, %s181, %s182
    %p186 = pneg %p180
    %p187 = scmp.eq.s32.totalorder %s15, 3
    %p188 = por %p186, %p187
    %p189 = scmp.ne.s32.totalorder %s181, %s184
    %p190 = scmp.eq.s32.totalorder %s15, 0
    %p191 = por %p189, %p190
    %p192 = scmp.ne.s32.totalorder %s181, %s184
    %p193 = scmp.eq.s32.totalorder %s20, 3
    %p194 = por %p192, %p193
    %p195 = scmp.ne.s32.totalorder %s184, %s185
    %p196 = scmp.eq.s32.totalorder %s20, 0
    %p197 = por %p195, %p196
    %p198 = scmp.ne.s32.totalorder %s184, %s185
    %p199 = scmp.eq.s32.totalorder %s21, 3
    %p200 = por %p198, %p199
    %p202 = scmp.ne.s32.totalorder %s185, %s201
    %p203 = scmp.eq.s32.totalorder %s21, 0
    %p204 = por %p202, %p203
    %s205 = ssub.s32 %s15, %s22
    %p206 = scmp.eq.s32.totalorder %s205, 0
    %s208 = sadd.s32 %s207, 1
    %s209 = scalar_select %p206, %s207, %s208
    %p212 = pneg %p206
    %p213 = scmp.eq.s32.totalorder %s15, 3
    %p214 = por %p212, %p213
    %p215 = scmp.ne.s32.totalorder %s207, %s210
    %p216 = scmp.eq.s32.totalorder %s15, 0
    %p217 = por %p215, %p216
    %p218 = scmp.ne.s32.totalorder %s207, %s210
    %p219 = scmp.eq.s32.totalorder %s20, 3
    %p220 = por %p218, %p219
    %p221 = scmp.ne.s32.totalorder %s210, %s211
    %p222 = scmp.eq.s32.totalorder %s20, 0
    %p223 = por %p221, %p222
    %p224 = scmp.ne.s32.totalorder %s210, %s211
    %p225 = scmp.eq.s32.totalorder %s21, 3
    %p226 = por %p224, %p225
    %p228 = scmp.ne.s32.totalorder %s211, %s227
    %p229 = scmp.eq.s32.totalorder %s21, 0
    %p230 = por %p228, %p229
    %s231 = ssub.s32 %s15, %s22
    %p232 = scmp.eq.s32.totalorder %s231, 0
    %s234 = sadd.s32 %s233, 1
    %s235 = scalar_select %p232, %s233, %s234
    %p238 = pneg %p232
    %p239 = scmp.eq.s32.totalorder %s15, 3
    %p240 = por %p238, %p239
    %p241 = scmp.ne.s32.totalorder %s233, %s236
    %p242 = scmp.eq.s32.totalorder %s15, 0
    %p243 = por %p241, %p242
    %p244 = scmp.ne.s32.totalorder %s233, %s236
    %p245 = scmp.eq.s32.totalorder %s20, 3
    %p246 = por %p244, %p245
    %p247 = scmp.ne.s32.totalorder %s236, %s237
    %p248 = scmp.eq.s32.totalorder %s20, 0
    %p249 = por %p247, %p248
    %p250 = scmp.ne.s32.totalorder %s236, %s237
    %p251 = scmp.eq.s32.totalorder %s21, 3
    %p252 = por %p250, %p251
    %p254 = scmp.ne.s32.totalorder %s237, %s253
    %p255 = scmp.eq.s32.totalorder %s21, 0
    %p256 = por %p254, %p255
    %s257 = ssub.s32 %s15, %s22
    %p258 = scmp.eq.s32.totalorder %s257, 0
    %s260 = sadd.s32 %s259, 1
    %s261 = scalar_select %p258, %s259, %s260
    %p264 = pneg %p258
    %p265 = scmp.eq.s32.totalorder %s15, 3
    %p266 = por %p264, %p265
    %p267 = scmp.ne.s32.totalorder %s259, %s262
    %p268 = scmp.eq.s32.totalorder %s15, 0
    %p269 = por %p267, %p268
    %p270 = scmp.ne.s32.totalorder %s259, %s262
    %p271 = scmp.eq.s32.totalorder %s20, 3
    %p272 = por %p270, %p271
    %p273 = scmp.ne.s32.totalorder %s262, %s263
    %p274 = scmp.eq.s32.totalorder %s20, 0
    %p275 = por %p273, %p274
    %p276 = scmp.ne.s32.totalorder %s262, %s263
    %p277 = scmp.eq.s32.totalorder %s21, 3
    %p278 = por %p276, %p277
    %p280 = scmp.ne.s32.totalorder %s263, %s279
    %p281 = scmp.eq.s32.totalorder %s21, 0
    %p282 = por %p280, %p281
    %p283 = scmp.le.s32.totalorder 1, %s15
    %p284 = scmp.lt.s32.totalorder %s15, 5
    %p285 = pnand %p283, %p284
    %p286 = pneg %p285
    // Predicated region
    $region9: #{net_forward.1} parent=5 // pred_check
      _
    $region10: #{net_forward.1} parent=5 // pred_check_branch
      %288 = sbr.rel (%p285) target = $region12
    $region11: #{net_forward.1} parent=5 // pred_region
      %s289 = ssub.s32 %s15, 1
    $region12: #{net_forward.1} parent=5 // pred_fallthru
      _
    %p290 = scmp.lt.s32.totalorder %s15, 4
    // Predicated region
    $region13: #{net_forward.1} parent=5 // pred_check
      %p291 = pneg %p290
    $region14: #{net_forward.1} parent=5 // pred_check_branch
      %293 = sbr.rel (%p291) target = $region16
    $region15: #{net_forward.1} parent=5 // pred_region
      // Predicated region
      $region17: #{net_forward.1} parent=15 // pred_check
        %p294 = pneg %p35
      $region18: #{net_forward.1} parent=15 // pred_check_branch
        %296 = sbr.rel (%p294) target = $region20
      $region19: #{net_forward.1} parent=15 // pred_region
        %p297 = scmp.lt.s32.totalorder %s15, 3
        %s298 = scalar_select %p297, %s15, 3
        %s299 = smul.addr %s298, 16
        %s300 = smul.addr %s299, 8
        %s301 = scalar_lea.vmem %s0, %s300
      $region20: #{net_forward.1} parent=15 // pred_fallthru
        _
      // Predicated region
      $region21: #{net_forward.1} parent=15 // pred_check
        %p302 = pneg %p61
      $region22: #{net_forward.1} parent=15 // pred_check_branch
        %304 = sbr.rel (%p302) target = $region24
      $region23: #{net_forward.1} parent=15 // pred_region
        %p305 = scmp.lt.s32.totalorder %s15, 3
        %s306 = scalar_select %p305, %s15, 3
        %s307 = smul.addr %s306, 3
        %s308 = smul.addr %s307, 8
        %s309 = scalar_lea.vmem %s1, %s308
      $region24: #{net_forward.1} parent=15 // pred_fallthru
        _
      // Predicated region
      $region25: #{net_forward.1} parent=15 // pred_check
        %p310 = pneg %p87
      $region26: #{net_forward.1} parent=15 // pred_check_branch
        %312 = sbr.rel (%p310) target = $region28
      $region27: #{net_forward.1} parent=15 // pred_region
        %p313 = scmp.lt.s32.totalorder %s15, 3
        %s314 = scalar_select %p313, %s15, 3
        %s315 = scalar_lea.vmem %s2, %s314
      $region28: #{net_forward.1} parent=15 // pred_fallthru
        _
      // Predicated region
      $region29: #{net_forward.1} parent=15 // pred_check
        %p316 = pneg %p113
      $region30: #{net_forward.1} parent=15 // pred_check_branch
        %318 = sbr.rel (%p316) target = $region32
      $region31: #{net_forward.1} parent=15 // pred_region
        %p319 = scmp.lt.s32.totalorder %s15, 3
        %s320 = scalar_select %p319, %s15, 3
        %s321 = smul.addr %s320, 5
        %s322 = smul.addr %s321, 8
        %s323 = scalar_lea.vmem %s3, %s322
      $region32: #{net_forward.1} parent=15 // pred_fallthru
        _
      // Predicated region
      $region33: #{net_forward.1} parent=15 // pred_check
        %p324 = pneg %p139
      $region34: #{net_forward.1} parent=15 // pred_check_branch
        %326 = sbr.rel (%p324) target = $region36
      $region35: #{net_forward.1} parent=15 // pred_region
        %p327 = scmp.lt.s32.totalorder %s15, 3
        %s328 = scalar_select %p327, %s15, 3
        %s329 = scalar_lea.vmem %s4, %s328
      $region36: #{net_forward.1} parent=15 // pred_fallthru
        _
      // Predicated region
      $region37: #{net_forward.1} parent=15 // pred_check
        %p330 = pneg %p165
      $region38: #{net_forward.1} parent=15 // pred_check_branch
        %332 = sbr.rel (%p330) target = $region40
      $region39: #{net_forward.1} parent=15 // pred_region
        %p333 = scmp.lt.s32.totalorder %s15, 3
        %s334 = scalar_select %p333, %s15, 3
        %s335 = smul.addr %s334, 32
        %s336 = smul.addr %s335, 8
        %s337 = scalar_lea.vmem %s5, %s336
      $region40: #{net_forward.1} parent=15 // pred_fallthru
        _
      // Predicated region
      $region41: #{net_forward.1} parent=15 // pred_check
        %p338 = pneg %p191
      $region42: #{net_forward.1} parent=15 // pred_check_branch
        %340 = sbr.rel (%p338) target = $region44
      $region43: #{net_forward.1} parent=15 // pred_region
        %p341 = scmp.lt.s32.totalorder %s15, 3
        %s342 = scalar_select %p341, %s15, 3
        %s343 = scalar_lea.vmem %s6, %s342
      $region44: #{net_forward.1} parent=15 // pred_fallthru
        _
      // Predicated region
      $region45: #{net_forward.1} parent=15 // pred_check
        %p344 = pneg %p217
      $region46: #{net_forward.1} parent=15 // pred_check_branch
        %346 = sbr.rel (%p344) target = $region48
      $region47: #{net_forward.1} parent=15 // pred_region
        %p347 = scmp.lt.s32.totalorder %s15, 3
        %s348 = scalar_select %p347, %s15, 3
        %s349 = smul.addr %s348, 4
        %s350 = smul.addr %s349, 8
        %s351 = scalar_lea.vmem %s7, %s350
      $region48: #{net_forward.1} parent=15 // pred_fallthru
        _
      // Predicated region
      $region49: #{net_forward.1} parent=15 // pred_check
        %p352 = pneg %p243
      $region50: #{net_forward.1} parent=15 // pred_check_branch
        %354 = sbr.rel (%p352) target = $region52
      $region51: #{net_forward.1} parent=15 // pred_region
        %p355 = scmp.lt.s32.totalorder %s15, 3
        %s356 = scalar_select %p355, %s15, 3
        %s357 = scalar_lea.vmem %s8, %s356
      $region52: #{net_forward.1} parent=15 // pred_fallthru
        _
    $region16: #{net_forward.1} parent=5 // pred_fallthru
      _
    %p358 = scmp.le.s32.totalorder 1, %s15
    %p359 = scmp.lt.s32.totalorder %s15, 5
    %p360 = pnand %p358, %p359
    %p361 = pneg %p360
    // Predicated region
    $region53: #{net_forward.1} parent=5 // pred_check
      _
    $region54: #{net_forward.1} parent=5 // pred_check_branch
      %363 = sbr.rel (%p360) target = $region56
    $region55: #{net_forward.1} parent=5 // pred_region
      %s364 = ssub.s32 %s15, 1
      %p365 = scmp.lt.s32.totalorder %s20, 3
      %s366 = scalar_select %p365, %s20, 3
      %s367 = smul.addr %s366, 16
      %s368 = smul.addr %s367, 8
      %s369 = scalar_lea.vmem %s0, %s368
      %p370 = pneg %p41
      %p371 = pneg %p38
      %p372 = scmp.lt.s32.totalorder %s20, 3
      %s373 = scalar_select %p372, %s20, 3
      %s374 = smul.addr %s373, 3
      %s375 = smul.addr %s374, 8
      %s376 = scalar_lea.vmem %s1, %s375
      %p377 = pneg %p67
      %p378 = pneg %p64
      %p379 = scmp.lt.s32.totalorder %s20, 3
      %s380 = scalar_select %p379, %s20, 3
      %s381 = scalar_lea.vmem %s2, %s380
      %p382 = pneg %p93
      %p383 = pneg %p90
      %p384 = scmp.lt.s32.totalorder %s20, 3
      %s385 = scalar_select %p384, %s20, 3
      %s386 = smul.addr %s385, 5
      %s387 = smul.addr %s386, 8
      %s388 = scalar_lea.vmem %s3, %s387
      %p389 = pneg %p119
      %p390 = pneg %p116
      %p391 = scmp.lt.s32.totalorder %s20, 3
      %s392 = scalar_select %p391, %s20, 3
      %s393 = scalar_lea.vmem %s4, %s392
      %p394 = pneg %p145
      %p395 = pneg %p142
      %p396 = scmp.lt.s32.totalorder %s20, 3
      %s397 = scalar_select %p396, %s20, 3
      %s398 = smul.addr %s397, 32
      %s399 = smul.addr %s398, 8
      %s400 = scalar_lea.vmem %s5, %s399
      %p401 = pneg %p171
      %p402 = pneg %p168
      %p403 = scmp.lt.s32.totalorder %s20, 3
      %s404 = scalar_select %p403, %s20, 3
      %s405 = scalar_lea.vmem %s6, %s404
      %p406 = pneg %p197
      %p407 = pneg %p194
      %p408 = scmp.lt.s32.totalorder %s20, 3
      %s409 = scalar_select %p408, %s20, 3
      %s410 = smul.addr %s409, 4
      %s411 = smul.addr %s410, 8
      %s412 = scalar_lea.vmem %s7, %s411
      %p413 = pneg %p223
      %p414 = pneg %p220
      %p415 = scmp.lt.s32.totalorder %s20, 3
      %s416 = scalar_select %p415, %s20, 3
      %s417 = scalar_lea.vmem %s8, %s416
      %p418 = pneg %p249
      %p419 = pneg %p246
      %p420 = pneg %p275
      %p421 = pneg %p272
      %p422 = scmp.lt.s32.totalorder %s20, 3
      %s423 = scalar_select %p422, %s20, 3
      %s424 = smul.addr %s423, 2
      %s425 = scalar_lea.vmem %s9, %s424
      %p426 = scmp.lt.s32.totalorder %s20, 3
      %s427 = scalar_select %p426, %s20, 3
      %s428 = smul.addr %s427, 16
      %s429 = smul.addr %s428, 8
      %s430 = scalar_lea.vmem %s0, %s429
      %p431 = scmp.lt.s32.totalorder %s20, 3
      %s432 = scalar_select %p431, %s20, 3
      %s433 = smul.addr %s432, 3
      %s434 = smul.addr %s433, 8
      %s435 = scalar_lea.vmem %s1, %s434
      %p436 = scmp.lt.s32.totalorder %s20, 3
      %s437 = scalar_select %p436, %s20, 3
      %s438 = scalar_lea.vmem %s2, %s437
      %p439 = scmp.lt.s32.totalorder %s20, 3
      %s440 = scalar_select %p439, %s20, 3
      %s441 = smul.addr %s440, 5
      %s442 = smul.addr %s441, 8
      %s443 = scalar_lea.vmem %s3, %s442
      %p444 = scmp.lt.s32.totalorder %s20, 3
      %s445 = scalar_select %p444, %s20, 3
      %s446 = scalar_lea.vmem %s4, %s445
      %p447 = scmp.lt.s32.totalorder %s20, 3
      %s448 = scalar_select %p447, %s20, 3
      %s449 = smul.addr %s448, 32
      %s450 = smul.addr %s449, 8
      %s451 = scalar_lea.vmem %s5, %s450
      %p452 = scmp.lt.s32.totalorder %s20, 3
      %s453 = scalar_select %p452, %s20, 3
      %s454 = scalar_lea.vmem %s6, %s453
      %p455 = scmp.lt.s32.totalorder %s20, 3
      %s456 = scalar_select %p455, %s20, 3
      %s457 = smul.addr %s456, 4
      %s458 = smul.addr %s457, 8
      %s459 = scalar_lea.vmem %s7, %s458
      %p460 = scmp.lt.s32.totalorder %s20, 3
      %s461 = scalar_select %p460, %s20, 3
      %s462 = scalar_lea.vmem %s8, %s461
      %p463 = scmp.lt.s32.totalorder %s20, 3
      %s464 = scalar_select %p463, %s20, 3
      %s465 = smul.addr %s464, 2
      %s466 = scalar_lea.vmem %s9, %s465
      %v467 = vld [vmem:[%s430] sm:$0xff]
      %v468 = vld [vmem:[%s430 + $0x8] sm:$0xff]
      %v469 = vld [vmem:[%s430 + $0x10] sm:$0xff]
      %v470 = vld [vmem:[%s430 + $0x18] sm:$0xff]
      %v471 = vld [vmem:[%s430 + $0x20] sm:$0xff]
      %v472 = vld [vmem:[%s430 + $0x28] sm:$0xff]
      %v473 = vld [vmem:[%s430 + $0x30] sm:$0xff]
      %v474 = vld [vmem:[%s430 + $0x38] sm:$0xff]
      %v475 = vld [vmem:[%s430 + $0x40] sm:$0xff]
      %v476 = vld [vmem:[%s430 + $0x48] sm:$0xff]
      %v477 = vld [vmem:[%s430 + $0x50] sm:$0xff]
      %v478 = vld [vmem:[%s430 + $0x58] sm:$0xff]
      %v479 = vld [vmem:[%s430 + $0x60] sm:$0xff]
      %v480 = vld [vmem:[%s430 + $0x68] sm:$0xff]
      %v481 = vld [vmem:[%s430 + $0x70] sm:$0xff]
      %v482 = vld [vmem:[%s430 + $0x78] sm:$0xff]
      %v499 = vrot.slane %v467, 7
      %v500 = vrot.slane %v468, 7
      %v501 = vrot.slane %v469, 7
      %v502 = vrot.slane %v470, 7
      %v503 = vrot.slane %v471, 7
      %v504 = vrot.slane %v472, 7
      %v505 = vrot.slane %v473, 7
      %v506 = vrot.slane %v474, 7
      %v507 = vrot.slane %v475, 7
      %v508 = vrot.slane %v476, 7
      %v509 = vrot.slane %v477, 7
      %v510 = vrot.slane %v478, 7
      %v511 = vrot.slane %v479, 7
      %v512 = vrot.slane %v480, 7
      %v513 = vrot.slane %v481, 7
      %v514 = vrot.slane %v482, 7
      %vm531 = vcmask 1040384
      %v532 = vsel %vm531, 0.0, %v499
      %v533 = vsel %vm531, 0.0, %v500
      %v534 = vsel %vm531, 0.0, %v501
      %v535 = vsel %vm531, 0.0, %v502
      %v536 = vsel %vm531, 0.0, %v503
      %v537 = vsel %vm531, 0.0, %v504
      %v538 = vsel %vm531, 0.0, %v505
      %v539 = vsel %vm531, 0.0, %v506
      %v540 = vsel %vm531, 0.0, %v507
      %v541 = vsel %vm531, 0.0, %v508
      %v542 = vsel %vm531, 0.0, %v509
      %v543 = vsel %vm531, 0.0, %v510
      %v544 = vsel %vm531, 0.0, %v511
      %v545 = vsel %vm531, 0.0, %v512
      %v546 = vsel %vm531, 0.0, %v513
      %v547 = vsel %vm531, 0.0, %v514
      %v548 = vsel %vm531, %v499, 0.0
      %v549 = vsel %vm531, %v500, 0.0
      %v550 = vsel %vm531, %v501, 0.0
      %v551 = vsel %vm531, %v502, 0.0
      %v552 = vsel %vm531, %v503, 0.0
      %v553 = vsel %vm531, %v504, 0.0
      %v554 = vsel %vm531, %v505, 0.0
      %v555 = vsel %vm531, %v506, 0.0
      %v556 = vsel %vm531, %v507, 0.0
      %v557 = vsel %vm531, %v508, 0.0
      %v558 = vsel %vm531, %v509, 0.0
      %v559 = vsel %vm531, %v510, 0.0
      %v560 = vsel %vm531, %v511, 0.0
      %v561 = vsel %vm531, %v512, 0.0
      %v562 = vsel %vm531, %v513, 0.0
      %v563 = vsel %vm531, %v514, 0.0
      %v564 = vld [vmem:[%s435] sm:$0xff]
      %v565 = vld [vmem:[%s435 + $0x8] sm:$0xff]
      %v566 = vld [vmem:[%s435 + $0x10] sm:$0x3]
      %v567 = vld [vmem:[%s438] sm:$0x1]
      %vm597 = vcmask 1046528
      %v598 = vrot.slane 0.0, 1
      %v599 = vsel %vm597, %v598, %v598
      %v600 = vrot.slane %v532, 1
      %v601 = vrot.slane %v548, 1
      %v602 = vsel %vm597, %v600, %v601
      %v603 = vrot.slane %v533, 1
      %v604 = vrot.slane %v549, 1
      %v605 = vsel %vm597, %v603, %v604
      %v606 = vrot.slane %v534, 1
      %v607 = vrot.slane %v550, 1
      %v608 = vsel %vm597, %v606, %v607
      %v609 = vrot.slane %v535, 1
      %v610 = vrot.slane %v551, 1
      %v611 = vsel %vm597, %v609, %v610
      %v612 = vrot.slane %v536, 1
      %v613 = vrot.slane %v552, 1
      %v614 = vsel %vm597, %v612, %v613
      %v615 = vrot.slane %v537, 1
      %v616 = vrot.slane %v553, 1
      %v617 = vsel %vm597, %v615, %v616
      %v618 = vrot.slane %v538, 1
      %v619 = vrot.slane %v554, 1
      %v620 = vsel %vm597, %v618, %v619
      %v621 = vrot.slane %v540, 1
      %v622 = vrot.slane %v556, 1
      %v623 = vsel %vm597, %v621, %v622
      %v624 = vrot.slane %v541, 1
      %v625 = vrot.slane %v557, 1
      %v626 = vsel %vm597, %v624, %v625
      %v627 = vrot.slane %v542, 1
      %v628 = vrot.slane %v558, 1
      %v629 = vsel %vm597, %v627, %v628
      %v630 = vrot.slane %v543, 1
      %v631 = vrot.slane %v559, 1
      %v632 = vsel %vm597, %v630, %v631
      %v633 = vrot.slane %v544, 1
      %v634 = vrot.slane %v560, 1
      %v635 = vsel %vm597, %v633, %v634
      %v636 = vrot.slane %v545, 1
      %v637 = vrot.slane %v561, 1
      %v638 = vsel %vm597, %v636, %v637
      %v639 = vrot.slane %v546, 1
      %v640 = vrot.slane %v562, 1
      %v641 = vsel %vm597, %v639, %v640
      %vm642 = vcmask 1045504
      %v643 = vrot.slane 0.0, 2
      %v644 = vsel %vm642, %v643, %v643
      %v645 = vrot.slane %v532, 2
      %v646 = vrot.slane %v548, 2
      %v647 = vsel %vm642, %v645, %v646
      %v648 = vrot.slane %v533, 2
      %v649 = vrot.slane %v549, 2
      %v650 = vsel %vm642, %v648, %v649
      %v651 = vrot.slane %v534, 2
      %v652 = vrot.slane %v550, 2
      %v653 = vsel %vm642, %v651, %v652
      %v654 = vrot.slane %v535, 2
      %v655 = vrot.slane %v551, 2
      %v656 = vsel %vm642, %v654, %v655
      %v657 = vrot.slane %v536, 2
      %v658 = vrot.slane %v552, 2
      %v659 = vsel %vm642, %v657, %v658
      %v660 = vrot.slane %v537, 2
      %v661 = vrot.slane %v553, 2
      %v662 = vsel %vm642, %v660, %v661
      %v663 = vrot.slane %v538, 2
      %v664 = vrot.slane %v554, 2
      %v665 = vsel %vm642, %v663, %v664
      %v666 = vrot.slane %v540, 2
      %v667 = vrot.slane %v556, 2
      %v668 = vsel %vm642, %v666, %v667
      %v669 = vrot.slane %v541, 2
      %v670 = vrot.slane %v557, 2
      %v671 = vsel %vm642, %v669, %v670
      %v672 = vrot.slane %v542, 2
      %v673 = vrot.slane %v558, 2
      %v674 = vsel %vm642, %v672, %v673
      %v675 = vrot.slane %v543, 2
      %v676 = vrot.slane %v559, 2
      %v677 = vsel %vm642, %v675, %v676
      %v678 = vrot.slane %v544, 2
      %v679 = vrot.slane %v560, 2
      %v680 = vsel %vm642, %v678, %v679
      %v681 = vrot.slane %v545, 2
      %v682 = vrot.slane %v561, 2
      %v683 = vsel %vm642, %v681, %v682
      %v684 = vrot.slane %v546, 2
      %v685 = vrot.slane %v562, 2
      %v686 = vsel %vm642, %v684, %v685
      %v691 = vrot.slane %v539, 1
      %v692 = vrot.slane %v555, 1
      %v693 = vsel %vm597, %v691, %v692
      %v694 = vrot.slane %v547, 1
      %v695 = vrot.slane %v563, 1
      %v696 = vsel %vm597, %v694, %v695
      %v697 = vrot.slane %v539, 2
      %v698 = vrot.slane %v555, 2
      %v699 = vsel %vm642, %v697, %v698
      %v700 = vrot.slane %v547, 2
      %v701 = vrot.slane %v563, 2
      %v702 = vsel %vm642, %v700, %v701
      %703 = vrot.lane.b32.xlu0 %v599, 2
      %v704 = vpop.permute.xlu0 %703
      %705 = vrot.lane.b32.xlu0 %v602, 2
      %v706 = vpop.permute.xlu0 %705
      %707 = vrot.lane.b32.xlu0 %v605, 2
      %v708 = vpop.permute.xlu0 %707
      %709 = vrot.lane.b32.xlu0 %v608, 2
      %v710 = vpop.permute.xlu0 %709
      %711 = vrot.lane.b32.xlu0 %v611, 2
      %v712 = vpop.permute.xlu0 %711
      %713 = vrot.lane.b32.xlu0 %v614, 2
      %v714 = vpop.permute.xlu0 %713
      %715 = vrot.lane.b32.xlu0 %v617, 2
      %v716 = vpop.permute.xlu0 %715
      %717 = vrot.lane.b32.xlu0 %v620, 2
      %v718 = vpop.permute.xlu0 %717
      %719 = vrot.lane.b32.xlu0 %v623, 2
      %v720 = vpop.permute.xlu0 %719
      %721 = vrot.lane.b32.xlu0 %v626, 2
      %v722 = vpop.permute.xlu0 %721
      %723 = vrot.lane.b32.xlu0 %v629, 2
      %v724 = vpop.permute.xlu0 %723
      %725 = vrot.lane.b32.xlu0 %v632, 2
      %v726 = vpop.permute.xlu0 %725
      %727 = vrot.lane.b32.xlu0 %v635, 2
      %v728 = vpop.permute.xlu0 %727
      %729 = vrot.lane.b32.xlu0 %v638, 2
      %v730 = vpop.permute.xlu0 %729
      %731 = vrot.lane.b32.xlu0 %v641, 2
      %v732 = vpop.permute.xlu0 %731
      %748 = vrot.lane.b32.xlu0 %v644, 4
      %v749 = vpop.permute.xlu0 %748
      %750 = vrot.lane.b32.xlu0 %v647, 4
      %v751 = vpop.permute.xlu0 %750
      %752 = vrot.lane.b32.xlu0 %v650, 4
      %v753 = vpop.permute.xlu0 %752
      %754 = vrot.lane.b32.xlu0 %v653, 4
      %v755 = vpop.permute.xlu0 %754
      %756 = vrot.lane.b32.xlu0 %v656, 4
      %v757 = vpop.permute.xlu0 %756
      %758 = vrot.lane.b32.xlu0 %v659, 4
      %v759 = vpop.permute.xlu0 %758
      %760 = vrot.lane.b32.xlu0 %v662, 4
      %v761 = vpop.permute.xlu0 %760
      %762 = vrot.lane.b32.xlu0 %v665, 4
      %v763 = vpop.permute.xlu0 %762
      %764 = vrot.lane.b32.xlu0 %v668, 4
      %v765 = vpop.permute.xlu0 %764
      %766 = vrot.lane.b32.xlu0 %v671, 4
      %v767 = vpop.permute.xlu0 %766
      %768 = vrot.lane.b32.xlu0 %v674, 4
      %v769 = vpop.permute.xlu0 %768
      %770 = vrot.lane.b32.xlu0 %v677, 4
      %v771 = vpop.permute.xlu0 %770
      %772 = vrot.lane.b32.xlu0 %v680, 4
      %v773 = vpop.permute.xlu0 %772
      %774 = vrot.lane.b32.xlu0 %v683, 4
      %v775 = vpop.permute.xlu0 %774
      %776 = vrot.lane.b32.xlu0 %v686, 4
      %v777 = vpop.permute.xlu0 %776
      %793 = vrot.lane.b32.xlu0 %v532, 6
      %v794 = vpop.permute.xlu0 %793
      %795 = vrot.lane.b32.xlu0 %v533, 6
      %v796 = vpop.permute.xlu0 %795
      %797 = vrot.lane.b32.xlu0 %v534, 6
      %v798 = vpop.permute.xlu0 %797
      %799 = vrot.lane.b32.xlu0 %v535, 6
      %v800 = vpop.permute.xlu0 %799
      %801 = vrot.lane.b32.xlu0 %v536, 6
      %v802 = vpop.permute.xlu0 %801
      %803 = vrot.lane.b32.xlu0 %v537, 6
      %v804 = vpop.permute.xlu0 %803
      %805 = vrot.lane.b32.xlu0 %v538, 6
      %v806 = vpop.permute.xlu0 %805
      %807 = vrot.lane.b32.xlu0 %v539, 6
      %v808 = vpop.permute.xlu0 %807
      %809 = vrot.lane.b32.xlu0 %v540, 6
      %v810 = vpop.permute.xlu0 %809
      %811 = vrot.lane.b32.xlu0 %v541, 6
      %v812 = vpop.permute.xlu0 %811
      %813 = vrot.lane.b32.xlu0 %v542, 6
      %v814 = vpop.permute.xlu0 %813
      %815 = vrot.lane.b32.xlu0 %v543, 6
      %v816 = vpop.permute.xlu0 %815
      %817 = vrot.lane.b32.xlu0 %v544, 6
      %v818 = vpop.permute.xlu0 %817
      %819 = vrot.lane.b32.xlu0 %v545, 6
      %v820 = vpop.permute.xlu0 %819
      %821 = vrot.lane.b32.xlu0 %v546, 6
      %v822 = vpop.permute.xlu0 %821
      %823 = vrot.lane.b32.xlu0 %v547, 6
      %v824 = vpop.permute.xlu0 %823
      %841 = vrot.lane.b32.xlu0 %v602, 8
      %v842 = vpop.permute.xlu0 %841
      %843 = vrot.lane.b32.xlu0 %v605, 8
      %v844 = vpop.permute.xlu0 %843
      %845 = vrot.lane.b32.xlu0 %v608, 8
      %v846 = vpop.permute.xlu0 %845
      %847 = vrot.lane.b32.xlu0 %v611, 8
      %v848 = vpop.permute.xlu0 %847
      %849 = vrot.lane.b32.xlu0 %v614, 8
      %v850 = vpop.permute.xlu0 %849
      %851 = vrot.lane.b32.xlu0 %v617, 8
      %v852 = vpop.permute.xlu0 %851
      %853 = vrot.lane.b32.xlu0 %v620, 8
      %v854 = vpop.permute.xlu0 %853
      %855 = vrot.lane.b32.xlu0 %v693, 8
      %v856 = vpop.permute.xlu0 %855
      %857 = vrot.lane.b32.xlu0 %v623, 8
      %v858 = vpop.permute.xlu0 %857
      %859 = vrot.lane.b32.xlu0 %v626, 8
      %v860 = vpop.permute.xlu0 %859
      %861 = vrot.lane.b32.xlu0 %v629, 8
      %v862 = vpop.permute.xlu0 %861
      %863 = vrot.lane.b32.xlu0 %v632, 8
      %v864 = vpop.permute.xlu0 %863
      %865 = vrot.lane.b32.xlu0 %v635, 8
      %v866 = vpop.permute.xlu0 %865
      %867 = vrot.lane.b32.xlu0 %v638, 8
      %v868 = vpop.permute.xlu0 %867
      %869 = vrot.lane.b32.xlu0 %v641, 8
      %v870 = vpop.permute.xlu0 %869
      %871 = vrot.lane.b32.xlu0 %v696, 8
      %v872 = vpop.permute.xlu0 %871
      %889 = vrot.lane.b32.xlu0 %v647, 10
      %v890 = vpop.permute.xlu0 %889
      %891 = vrot.lane.b32.xlu0 %v650, 10
      %v892 = vpop.permute.xlu0 %891
      %893 = vrot.lane.b32.xlu0 %v653, 10
      %v894 = vpop.permute.xlu0 %893
      %895 = vrot.lane.b32.xlu0 %v656, 10
      %v896 = vpop.permute.xlu0 %895
      %897 = vrot.lane.b32.xlu0 %v659, 10
      %v898 = vpop.permute.xlu0 %897
      %899 = vrot.lane.b32.xlu0 %v662, 10
      %v900 = vpop.permute.xlu0 %899
      %901 = vrot.lane.b32.xlu0 %v665, 10
      %v902 = vpop.permute.xlu0 %901
      %903 = vrot.lane.b32.xlu0 %v699, 10
      %v904 = vpop.permute.xlu0 %903
      %905 = vrot.lane.b32.xlu0 %v668, 10
      %v906 = vpop.permute.xlu0 %905
      %907 = vrot.lane.b32.xlu0 %v671, 10
      %v908 = vpop.permute.xlu0 %907
      %909 = vrot.lane.b32.xlu0 %v674, 10
      %v910 = vpop.permute.xlu0 %909
      %911 = vrot.lane.b32.xlu0 %v677, 10
      %v912 = vpop.permute.xlu0 %911
      %913 = vrot.lane.b32.xlu0 %v680, 10
      %v914 = vpop.permute.xlu0 %913
      %915 = vrot.lane.b32.xlu0 %v683, 10
      %v916 = vpop.permute.xlu0 %915
      %917 = vrot.lane.b32.xlu0 %v686, 10
      %v918 = vpop.permute.xlu0 %917
      %919 = vrot.lane.b32.xlu0 %v702, 10
      %v920 = vpop.permute.xlu0 %919
      %937 = vrot.lane.b32.xlu0 %v533, 12
      %v938 = vpop.permute.xlu0 %937
      %939 = vrot.lane.b32.xlu0 %v534, 12
      %v940 = vpop.permute.xlu0 %939
      %941 = vrot.lane.b32.xlu0 %v535, 12
      %v942 = vpop.permute.xlu0 %941
      %943 = vrot.lane.b32.xlu0 %v536, 12
      %v944 = vpop.permute.xlu0 %943
      %945 = vrot.lane.b32.xlu0 %v537, 12
      %v946 = vpop.permute.xlu0 %945
      %947 = vrot.lane.b32.xlu0 %v538, 12
      %v948 = vpop.permute.xlu0 %947
      %949 = vrot.lane.b32.xlu0 %v539, 12
      %v950 = vpop.permute.xlu0 %949
      %951 = vrot.lane.b32.xlu0 0.0, 12
      %v952 = vpop.permute.xlu0 %951
      %953 = vrot.lane.b32.xlu0 %v541, 12
      %v954 = vpop.permute.xlu0 %953
      %955 = vrot.lane.b32.xlu0 %v542, 12
      %v956 = vpop.permute.xlu0 %955
      %957 = vrot.lane.b32.xlu0 %v543, 12
      %v958 = vpop.permute.xlu0 %957
      %959 = vrot.lane.b32.xlu0 %v544, 12
      %v960 = vpop.permute.xlu0 %959
      %961 = vrot.lane.b32.xlu0 %v545, 12
      %v962 = vpop.permute.xlu0 %961
      %963 = vrot.lane.b32.xlu0 %v546, 12
      %v964 = vpop.permute.xlu0 %963
      %965 = vrot.lane.b32.xlu0 %v547, 12
      %v966 = vpop.permute.xlu0 %965
      %982 = vrot.lane.b32.xlu0 %v605, 14
      %v983 = vpop.permute.xlu0 %982
      %984 = vrot.lane.b32.xlu0 %v608, 14
      %v985 = vpop.permute.xlu0 %984
      %986 = vrot.lane.b32.xlu0 %v611, 14
      %v987 = vpop.permute.xlu0 %986
      %988 = vrot.lane.b32.xlu0 %v614, 14
      %v989 = vpop.permute.xlu0 %988
      %990 = vrot.lane.b32.xlu0 %v617, 14
      %v991 = vpop.permute.xlu0 %990
      %992 = vrot.lane.b32.xlu0 %v620, 14
      %v993 = vpop.permute.xlu0 %992
      %994 = vrot.lane.b32.xlu0 %v693, 14
      %v995 = vpop.permute.xlu0 %994
      %996 = vrot.lane.b32.xlu0 %v599, 14
      %v997 = vpop.permute.xlu0 %996
      %998 = vrot.lane.b32.xlu0 %v626, 14
      %v999 = vpop.permute.xlu0 %998
      %1000 = vrot.lane.b32.xlu0 %v629, 14
      %v1001 = vpop.permute.xlu0 %1000
      %1002 = vrot.lane.b32.xlu0 %v632, 14
      %v1003 = vpop.permute.xlu0 %1002
      %1004 = vrot.lane.b32.xlu0 %v635, 14
      %v1005 = vpop.permute.xlu0 %1004
      %1006 = vrot.lane.b32.xlu0 %v638, 14
      %v1007 = vpop.permute.xlu0 %1006
      %1008 = vrot.lane.b32.xlu0 %v641, 14
      %v1009 = vpop.permute.xlu0 %1008
      %1010 = vrot.lane.b32.xlu0 %v696, 14
      %v1011 = vpop.permute.xlu0 %1010
      %1027 = vrot.lane.b32.xlu0 %v650, 16
      %v1028 = vpop.permute.xlu0 %1027
      %1029 = vrot.lane.b32.xlu0 %v653, 16
      %v1030 = vpop.permute.xlu0 %1029
      %1031 = vrot.lane.b32.xlu0 %v656, 16
      %v1032 = vpop.permute.xlu0 %1031
      %1033 = vrot.lane.b32.xlu0 %v659, 16
      %v1034 = vpop.permute.xlu0 %1033
      %1035 = vrot.lane.b32.xlu0 %v662, 16
      %v1036 = vpop.permute.xlu0 %1035
      %1037 = vrot.lane.b32.xlu0 %v665, 16
      %v1038 = vpop.permute.xlu0 %1037
      %1039 = vrot.lane.b32.xlu0 %v699, 16
      %v1040 = vpop.permute.xlu0 %1039
      %1041 = vrot.lane.b32.xlu0 %v644, 16
      %v1042 = vpop.permute.xlu0 %1041
      %1043 = vrot.lane.b32.xlu0 %v671, 16
      %v1044 = vpop.permute.xlu0 %1043
      %1045 = vrot.lane.b32.xlu0 %v674, 16
      %v1046 = vpop.permute.xlu0 %1045
      %1047 = vrot.lane.b32.xlu0 %v677, 16
      %v1048 = vpop.permute.xlu0 %1047
      %1049 = vrot.lane.b32.xlu0 %v680, 16
      %v1050 = vpop.permute.xlu0 %1049
      %1051 = vrot.lane.b32.xlu0 %v683, 16
      %v1052 = vpop.permute.xlu0 %1051
      %1053 = vrot.lane.b32.xlu0 %v686, 16
      %v1054 = vpop.permute.xlu0 %1053
      %1055 = vrot.lane.b32.xlu0 %v702, 16
      %v1056 = vpop.permute.xlu0 %1055
      %vm1072 = vcmask 15360
      %v1073 = vsel %vm1072, 0.0, %v704
      %v1074 = vsel %vm1072, %v532, %v706
      %v1075 = vsel %vm1072, %v533, %v708
      %v1076 = vsel %vm1072, %v534, %v710
      %v1077 = vsel %vm1072, %v535, %v712
      %v1078 = vsel %vm1072, %v536, %v714
      %v1079 = vsel %vm1072, %v537, %v716
      %v1080 = vsel %vm1072, %v538, %v718
      %v1081 = vsel %vm1072, %v540, %v720
      %v1082 = vsel %vm1072, %v541, %v722
      %v1083 = vsel %vm1072, %v542, %v724
      %v1084 = vsel %vm1072, %v543, %v726
      %v1085 = vsel %vm1072, %v544, %v728
      %v1086 = vsel %vm1072, %v545, %v730
      %v1087 = vsel %vm1072, %v546, %v732
      %vm1088 = vcmask 31744
      %v1089 = vsel %vm1088, %v1073, %v749
      %v1090 = vsel %vm1088, %v1074, %v751
      %v1091 = vsel %vm1088, %v1075, %v753
      %v1092 = vsel %vm1088, %v1076, %v755
      %v1093 = vsel %vm1088, %v1077, %v757
      %v1094 = vsel %vm1088, %v1078, %v759
      %v1095 = vsel %vm1088, %v1079, %v761
      %v1096 = vsel %vm1088, %v1080, %v763
      %v1097 = vsel %vm1088, %v1081, %v765
      %v1098 = vsel %vm1088, %v1082, %v767
      %v1099 = vsel %vm1088, %v1083, %v769
      %v1100 = vsel %vm1088, %v1084, %v771
      %v1101 = vsel %vm1088, %v1085, %v773
      %v1102 = vsel %vm1088, %v1086, %v775
      %v1103 = vsel %vm1088, %v1087, %v777
      %vm1104 = vcmask 48128
      %v1105 = vsel %vm1104, %v1089, %v794
      %v1106 = vsel %vm1104, %v1090, %v796
      %v1107 = vsel %vm1104, %v1091, %v798
      %v1108 = vsel %vm1104, %v1092, %v800
      %v1109 = vsel %vm1104, %v1093, %v802
      %v1110 = vsel %vm1104, %v1094, %v804
      %v1111 = vsel %vm1104, %v1095, %v806
      %v1112 = vsel %vm1104, %v1096, %v808
      %v1113 = vsel %vm1104, %v1089, %v810
      %v1114 = vsel %vm1104, %v1097, %v812
      %v1115 = vsel %vm1104, %v1098, %v814
      %v1116 = vsel %vm1104, %v1099, %v816
      %v1117 = vsel %vm1104, %v1100, %v818
      %v1118 = vsel %vm1104, %v1101, %v820
      %v1119 = vsel %vm1104, %v1102, %v822
      %v1120 = vsel %vm1104, %v1103, %v824
      %vm1121 = vcmask 64512
      %v1122 = vsel %vm1121, %v1105, %v842
      %v1123 = vsel %vm1121, %v1106, %v844
      %v1124 = vsel %vm1121, %v1107, %v846
      %v1125 = vsel %vm1121, %v1108, %v848
      %v1126 = vsel %vm1121, %v1109, %v850
      %v1127 = vsel %vm1121, %v1110, %v852
      %v1128 = vsel %vm1121, %v1111, %v854
      %v1129 = vsel %vm1121, %v1112, %v856
      %v1130 = vsel %vm1121, %v1113, %v858
      %v1131 = vsel %vm1121, %v1114, %v860
      %v1132 = vsel %vm1121, %v1115, %v862
      %v1133 = vsel %vm1121, %v1116, %v864
      %v1134 = vsel %vm1121, %v1117, %v866
      %v1135 = vsel %vm1121, %v1118, %v868
      %v1136 = vsel %vm1121, %v1119, %v870
      %v1137 = vsel %vm1121, %v1120, %v872
      %vm1138 = vcmask 80896
      %v1139 = vsel %vm1138, %v1122, %v890
      %v1140 = vsel %vm1138, %v1123, %v892
      %v1141 = vsel %vm1138, %v1124, %v894
      %v1142 = vsel %vm1138, %v1125, %v896
      %v1143 = vsel %vm1138, %v1126, %v898
      %v1144 = vsel %vm1138, %v1127, %v900
      %v1145 = vsel %vm1138, %v1128, %v902
      %v1146 = vsel %vm1138, %v1129, %v904
      %v1147 = vsel %vm1138, %v1130, %v906
      %v1148 = vsel %vm1138, %v1131, %v908
      %v1149 = vsel %vm1138, %v1132, %v910
      %v1150 = vsel %vm1138, %v1133, %v912
      %v1151 = vsel %vm1138, %v1134, %v914
      %v1152 = vsel %vm1138, %v1135, %v916
      %v1153 = vsel %vm1138, %v1136, %v918
      %v1154 = vsel %vm1138, %v1137, %v920
      %vm1155 = vcmask 97280
      %v1156 = vsel %vm1155, %v1139, %v938
      %v1157 = vsel %vm1155, %v1140, %v940
      %v1158 = vsel %vm1155, %v1141, %v942
      %v1159 = vsel %vm1155, %v1142, %v944
      %v1160 = vsel %vm1155, %v1143, %v946
      %v1161 = vsel %vm1155, %v1144, %v948
      %v1162 = vsel %vm1155, %v1145, %v950
      %v1163 = vsel %vm1155, %v1146, %v952
      %v1164 = vsel %vm1155, %v1147, %v954
      %v1165 = vsel %vm1155, %v1148, %v956
      %v1166 = vsel %vm1155, %v1149, %v958
      %v1167 = vsel %vm1155, %v1150, %v960
      %v1168 = vsel %vm1155, %v1151, %v962
      %v1169 = vsel %vm1155, %v1152, %v964
      %v1170 = vsel %vm1155, %v1153, %v966
      %v1171 = vsel %vm1155, %v1154, %v952
      %vm1172 = vcmask 113664
      %v1173 = vsel %vm1172, %v1156, %v983
      %v1174 = vsel %vm1172, %v1157, %v985
      %v1175 = vsel %vm1172, %v1158, %v987
      %v1176 = vsel %vm1172, %v1159, %v989
      %v1177 = vsel %vm1172, %v1160, %v991
      %v1178 = vsel %vm1172, %v1161, %v993
      %v1179 = vsel %vm1172, %v1162, %v995
      %v1180 = vsel %vm1172, %v1163, %v997
      %v1181 = vsel %vm1172, %v1164, %v999
      %v1182 = vsel %vm1172, %v1165, %v1001
      %v1183 = vsel %vm1172, %v1166, %v1003
      %v1184 = vsel %vm1172, %v1167, %v1005
      %v1185 = vsel %vm1172, %v1168, %v1007
      %v1186 = vsel %vm1172, %v1169, %v1009
      %v1187 = vsel %vm1172, %v1170, %v1011
      %v1188 = vsel %vm1172, %v1171, %v997
      %vm1189 = vcmask 130048
      %v1190 = vsel %vm1189, %v1173, %v1028
      %v1191 = vsel %vm1189, %v1174, %v1030
      %v1192 = vsel %vm1189, %v1175, %v1032
      %v1193 = vsel %vm1189, %v1176, %v1034
      %v1194 = vsel %vm1189, %v1177, %v1036
      %v1195 = vsel %vm1189, %v1178, %v1038
      %v1196 = vsel %vm1189, %v1179, %v1040
      %v1197 = vsel %vm1189, %v1180, %v1042
      %v1198 = vsel %vm1189, %v1181, %v1044
      %v1199 = vsel %vm1189, %v1182, %v1046
      %v1200 = vsel %vm1189, %v1183, %v1048
      %v1201 = vsel %vm1189, %v1184, %v1050
      %v1202 = vsel %vm1189, %v1185, %v1052
      %v1203 = vsel %vm1189, %v1186, %v1054
      %v1204 = vsel %vm1189, %v1187, %v1056
      %v1205 = vsel %vm1189, %v1188, %v1042
      %v1207 = vlaneseq
      %v1208 = vshrl.u32 %v1207, 7
      %v1209 = vsub.s32 0, %v1208
      %v1210 = vrot.slane %v567, %v1209
      %vm1212 = vcmask 146432
      %v1214 = vsel %vm1212, %v1190, 0
      %v1217 = vsel %vm1212, %v1191, 0
      %v1220 = vsel %vm1212, %v1192, 0
      %v1223 = vsel %vm1212, %v1193, 0
      %v1226 = vsel %vm1212, %v1194, 0
      %v1229 = vsel %vm1212, %v1195, 0
      %v1232 = vsel %vm1212, %v1196, 0
      %v1235 = vsel %vm1212, %v1197, 0
      %v1238 = vsel %vm1212, %v1198, 0
      %v1241 = vsel %vm1212, %v1199, 0
      %v1244 = vsel %vm1212, %v1200, 0
      %v1247 = vsel %vm1212, %v1201, 0
      %v1250 = vsel %vm1212, %v1202, 0
      %v1253 = vsel %vm1212, %v1203, 0
      %v1256 = vsel %vm1212, %v1204, 0
      %v1259 = vsel %vm1212, %v1205, 0
      %vm1261 = vcmask 1041408
      %v1263 = vsel %vm1261, %v566, 0
      %1265 = vmatprep.subr.mxu0 0.0
      %1266 = vmatpush1.msra.mxu0 %v564
      %1267 = vmatprep.subr.mxu0 0.0
      %1268 = vmatpush1.msra.mxu0 %v565
      %1269 = vmatprep.subr.mxu0 0.0
      %1270 = vmatpush1.msra.mxu0 %v1263
      %1271 = vmatprep.subr.mxu0 0.0
      %1272 = vmatpush1.msra.mxu0 0.0
      %1273 = vmatprep.subr.mxu0 0.0
      %1274 = vmatpush1.msra.mxu0 0.0
      %1275 = vmatprep.subr.mxu0 0.0
      %1276 = vmatpush1.msra.mxu0 0.0
      %1277 = vmatprep.subr.mxu0 0.0
      %1278 = vmatpush1.msra.mxu0 0.0
      %1279 = vmatprep.subr.mxu0 0.0
      %1280 = vmatpush1.msra.mxu0 0.0
      %1281 = vmatprep.subr.mxu0 0.0
      %1282 = vmatpush1.msra.mxu0 0.0
      %1283 = vmatprep.subr.mxu0 0.0
      %1284 = vmatpush1.msra.mxu0 0.0
      %1285 = vmatprep.subr.mxu0 0.0
      %1286 = vmatpush1.msra.mxu0 0.0
      %1287 = vmatprep.subr.mxu0 0.0
      %1288 = vmatpush1.msra.mxu0 0.0
      %1289 = vmatprep.subr.mxu0 0.0
      %1290 = vmatpush1.msra.mxu0 0.0
      %1291 = vmatprep.subr.mxu0 0.0
      %1292 = vmatpush1.msra.mxu0 0.0
      %1293 = vmatprep.subr.mxu0 0.0
      %1294 = vmatpush1.msra.mxu0 0.0
      %1295 = vmatprep.subr.mxu0 0.0
      %1296 = vmatpush1.msra.mxu0 0.0
      %1297 = vmatprep.subr.mxu0 0.0
      %1298 = vmatpush1.msra.mxu0 0.0
      %1299 = vmatprep.subr.mxu0 0.0
      %1300 = vmatpush1.msra.mxu0 0.0
      %1301 = vmatprep.subr.mxu0 0.0
      %1302 = vmatpush1.msra.mxu0 0.0
      %1303 = vmatprep.subr.mxu0 0.0
      %1304 = vmatpush1.msra.mxu0 0.0
      %1305 = vmatprep.subr.mxu0 0.0
      %1306 = vmatpush1.msra.mxu0 0.0
      %1307 = vmatprep.subr.mxu0 0.0
      %1308 = vmatpush1.msra.mxu0 0.0
      %1309 = vmatprep.subr.mxu0 0.0
      %1310 = vmatpush1.msra.mxu0 0.0
      %1311 = vmatprep.subr.mxu0 0.0
      %1312 = vmatpush1.msra.mxu0 0.0
      %1313 = vmatprep.subr.mxu0 0.0
      %1314 = vmatpush1.msra.mxu0 0.0
      %1315 = vmatprep.subr.mxu0 0.0
      %1316 = vmatpush1.msra.mxu0 0.0
      %1317 = vmatprep.subr.mxu0 0.0
      %1318 = vmatpush1.msra.mxu0 0.0
      %1319 = vmatprep.subr.mxu0 0.0
      %1320 = vmatpush1.msra.mxu0 0.0
      %1321 = vmatprep.subr.mxu0 0.0
      %1322 = vmatpush1.msra.mxu0 0.0
      %1323 = vmatprep.subr.mxu0 0.0
      %1324 = vmatpush1.msra.mxu0 0.0
      %1325 = vmatprep.subr.mxu0 0.0
      %1326 = vmatpush1.msra.mxu0 0.0
      %1327 = vmatprep.subr.mxu0 0.0
      %1328 = vmatpush1.msra.mxu0 0.0
      %1329 = vmatprep.mubr.f32.mxu0 0.0
      %1330 = vmatmul.mubr.f32.gmra.mrb[0].mxu0 %v1214
      %v1331 = vpop.f32.mrb[0].mxu0
      %v1332 = vadd.f32 %v1210, %v1331
      %v1333 = vpop.f32.mrb[0].mxu0
      %1334 = vmatprep.mubr.f32.mxu0 0.0
      %1335 = vmatmul.mubr.f32.gmra.mrb[0].mxu0 %v1217
      %v1336 = vpop.f32.mrb[0].mxu0
      %v1337 = vadd.f32 %v1210, %v1336
      %v1338 = vpop.f32.mrb[0].mxu0
      %1339 = vmatprep.mubr.f32.mxu0 0.0
      %1340 = vmatmul.mubr.f32.gmra.mrb[0].mxu0 %v1220
      %v1341 = vpop.f32.mrb[0].mxu0
      %v1342 = vadd.f32 %v1210, %v1341
      %v1343 = vpop.f32.mrb[0].mxu0
      %1344 = vmatprep.mubr.f32.mxu0 0.0
      %1345 = vmatmul.mubr.f32.gmra.mrb[0].mxu0 %v1223
      %v1346 = vpop.f32.mrb[0].mxu0
      %v1347 = vadd.f32 %v1210, %v1346
      %v1348 = vpop.f32.mrb[0].mxu0
      %1349 = vmatprep.mubr.f32.mxu0 0.0
      %1350 = vmatmul.mubr.f32.gmra.mrb[0].mxu0 %v1226
      %v1351 = vpop.f32.mrb[0].mxu0
      %v1352 = vadd.f32 %v1210, %v1351
      %v1353 = vpop.f32.mrb[0].mxu0
      %1354 = vmatprep.mubr.f32.mxu0 0.0
      %1355 = vmatmul.mubr.f32.gmra.mrb[0].mxu0 %v1229
      %v1356 = vpop.f32.mrb[0].mxu0
      %v1357 = vadd.f32 %v1210, %v1356
      %v1358 = vpop.f32.mrb[0].mxu0
      %1359 = vmatprep.mubr.f32.mxu0 0.0
      %1360 = vmatmul.mubr.f32.gmra.mrb[0].mxu0 %v1232
      %v1361 = vpop.f32.mrb[0].mxu0
      %v1362 = vadd.f32 %v1210, %v1361
      %v1363 = vpop.f32.mrb[0].mxu0
      %1364 = vmatprep.mubr.f32.mxu0 0.0
      %1365 = vmatmul.mubr.f32.gmra.mrb[0].mxu0 %v1235
      %v1366 = vpop.f32.mrb[0].mxu0
      %v1367 = vadd.f32 %v1210, %v1366
      %v1368 = vpop.f32.mrb[0].mxu0
      %1369 = vmatprep.mubr.f32.mxu0 0.0
      %1370 = vmatmul.mubr.f32.gmra.mrb[0].mxu0 %v1238
      %v1371 = vpop.f32.mrb[0].mxu0
      %v1372 = vadd.f32 %v1210, %v1371
      %v1373 = vpop.f32.mrb[0].mxu0
      %1374 = vmatprep.mubr.f32.mxu0 0.0
      %1375 = vmatmul.mubr.f32.gmra.mrb[0].mxu0 %v1241
      %v1376 = vpop.f32.mrb[0].mxu0
      %v1377 = vadd.f32 %v1210, %v1376
      %v1378 = vpop.f32.mrb[0].mxu0
      %1379 = vmatprep.mubr.f32.mxu0 0.0
      %1380 = vmatmul.mubr.f32.gmra.mrb[0].mxu0 %v1244
      %v1381 = vpop.f32.mrb[0].mxu0
      %v1382 = vadd.f32 %v1210, %v1381
      %v1383 = vpop.f32.mrb[0].mxu0
      %1384 = vmatprep.mubr.f32.mxu0 0.0
      %1385 = vmatmul.mubr.f32.gmra.mrb[0].mxu0 %v1247
      %v1386 = vpop.f32.mrb[0].mxu0
      %v1387 = vadd.f32 %v1210, %v1386
      %v1388 = vpop.f32.mrb[0].mxu0
      %1389 = vmatprep.mubr.f32.mxu0 0.0
      %1390 = vmatmul.mubr.f32.gmra.mrb[0].mxu0 %v1250
      %v1391 = vpop.f32.mrb[0].mxu0
      %v1392 = vadd.f32 %v1210, %v1391
      %v1393 = vpop.f32.mrb[0].mxu0
      %1394 = vmatprep.mubr.f32.mxu0 0.0
      %1395 = vmatmul.mubr.f32.gmra.mrb[0].mxu0 %v1253
      %v1396 = vpop.f32.mrb[0].mxu0
      %v1397 = vadd.f32 %v1210, %v1396
      %v1398 = vpop.f32.mrb[0].mxu0
      %1399 = vmatprep.mubr.f32.mxu0 0.0
      %1400 = vmatmul.mubr.f32.gmra.mrb[0].mxu0 %v1256
      %v1401 = vpop.f32.mrb[0].mxu0
      %v1402 = vadd.f32 %v1210, %v1401
      %v1403 = vpop.f32.mrb[0].mxu0
      %1404 = vmatprep.mubr.f32.mxu0 0.0
      %1405 = vmatmul.mubr.f32.gmra.mrb[0].mxu0 %v1259
      %v1406 = vpop.f32.mrb[0].mxu0
      %v1407 = vadd.f32 %v1210, %v1406
      %v1408 = vpop.f32.mrb[0].mxu0
      %1409 = vdwg.mxu0
      %vm1410 = vcmp.ge.f32.partialorder %v1332, 0.0
      %vm1411 = vcmp.ge.f32.partialorder %v1337, 0.0
      %vm1412 = vcmp.ge.f32.partialorder %v1342, 0.0
      %vm1413 = vcmp.ge.f32.partialorder %v1347, 0.0
      %vm1414 = vcmp.ge.f32.partialorder %v1352, 0.0
      %vm1415 = vcmp.ge.f32.partialorder %v1357, 0.0
      %vm1416 = vcmp.ge.f32.partialorder %v1362, 0.0
      %vm1417 = vcmp.ge.f32.partialorder %v1367, 0.0
      %vm1418 = vcmp.ge.f32.partialorder %v1372, 0.0
      %vm1419 = vcmp.ge.f32.partialorder %v1377, 0.0
      %vm1420 = vcmp.ge.f32.partialorder %v1382, 0.0
      %vm1421 = vcmp.ge.f32.partialorder %v1387, 0.0
      %vm1422 = vcmp.ge.f32.partialorder %v1392, 0.0
      %vm1423 = vcmp.ge.f32.partialorder %v1397, 0.0
      %vm1424 = vcmp.ge.f32.partialorder %v1402, 0.0
      %vm1425 = vcmp.ge.f32.partialorder %v1407, 0.0
      %v1426 = vmul.f32 %v1332, 0.01
      %v1427 = vmul.f32 %v1337, 0.01
      %v1428 = vmul.f32 %v1342, 0.01
      %v1429 = vmul.f32 %v1347, 0.01
      %v1430 = vmul.f32 %v1352, 0.01
      %v1431 = vmul.f32 %v1357, 0.01
      %v1432 = vmul.f32 %v1362, 0.01
      %v1433 = vmul.f32 %v1367, 0.01
      %v1434 = vmul.f32 %v1372, 0.01
      %v1435 = vmul.f32 %v1377, 0.01
      %v1436 = vmul.f32 %v1382, 0.01
      %v1437 = vmul.f32 %v1387, 0.01
      %v1438 = vmul.f32 %v1392, 0.01
      %v1439 = vmul.f32 %v1397, 0.01
      %v1440 = vmul.f32 %v1402, 0.01
      %v1441 = vmul.f32 %v1407, 0.01
      %v1442 = vsel %vm1410, %v1332, %v1426
      %v1443 = vsel %vm1411, %v1337, %v1427
      %v1444 = vsel %vm1412, %v1342, %v1428
      %v1445 = vsel %vm1413, %v1347, %v1429
      %v1446 = vsel %vm1414, %v1352, %v1430
      %v1447 = vsel %vm1415, %v1357, %v1431
      %v1448 = vsel %vm1416, %v1362, %v1432
      %v1449 = vsel %vm1417, %v1367, %v1433
      %v1450 = vsel %vm1418, %v1372, %v1434
      %v1451 = vsel %vm1419, %v1377, %v1435
      %v1452 = vsel %vm1420, %v1382, %v1436
      %v1453 = vsel %vm1421, %v1387, %v1437
      %v1454 = vsel %vm1422, %v1392, %v1438
      %v1455 = vsel %vm1423, %v1397, %v1439
      %v1456 = vsel %vm1424, %v1402, %v1440
      %v1457 = vsel %vm1425, %v1407, %v1441
      %v1474 = vrot.slane %v1442, 7
      %v1475 = vrot.slane %v1443, 7
      %v1476 = vrot.slane %v1444, 7
      %v1477 = vrot.slane %v1445, 7
      %v1478 = vrot.slane %v1446, 7
      %v1479 = vrot.slane %v1447, 7
      %v1480 = vrot.slane %v1448, 7
      %v1481 = vrot.slane %v1449, 7
      %v1482 = vrot.slane %v1450, 7
      %v1483 = vrot.slane %v1451, 7
      %v1484 = vrot.slane %v1452, 7
      %v1485 = vrot.slane %v1453, 7
      %v1486 = vrot.slane %v1454, 7
      %v1487 = vrot.slane %v1455, 7
      %v1488 = vrot.slane %v1456, 7
      %v1489 = vrot.slane %v1457, 7
      %v1506 = vsel %vm531, 0.0, %v1474
      %v1507 = vsel %vm531, 0.0, %v1475
      %v1508 = vsel %vm531, 0.0, %v1476
      %v1509 = vsel %vm531, 0.0, %v1477
      %v1510 = vsel %vm531, 0.0, %v1478
      %v1511 = vsel %vm531, 0.0, %v1479
      %v1512 = vsel %vm531, 0.0, %v1480
      %v1513 = vsel %vm531, 0.0, %v1481
      %v1514 = vsel %vm531, 0.0, %v1482
      %v1515 = vsel %vm531, 0.0, %v1483
      %v1516 = vsel %vm531, 0.0, %v1484
      %v1517 = vsel %vm531, 0.0, %v1485
      %v1518 = vsel %vm531, 0.0, %v1486
      %v1519 = vsel %vm531, 0.0, %v1487
      %v1520 = vsel %vm531, 0.0, %v1488
      %v1521 = vsel %vm531, 0.0, %v1489
      %v1522 = vsel %vm531, %v1474, 0.0
      %v1523 = vsel %vm531, %v1475, 0.0
      %v1524 = vsel %vm531, %v1476, 0.0
      %v1525 = vsel %vm531, %v1477, 0.0
      %v1526 = vsel %vm531, %v1478, 0.0
      %v1527 = vsel %vm531, %v1479, 0.0
      %v1528 = vsel %vm531, %v1480, 0.0
      %v1529 = vsel %vm531, %v1481, 0.0
      %v1530 = vsel %vm531, %v1482, 0.0
      %v1531 = vsel %vm531, %v1483, 0.0
      %v1532 = vsel %vm531, %v1484, 0.0
      %v1533 = vsel %vm531, %v1485, 0.0
      %v1534 = vsel %vm531, %v1486, 0.0
      %v1535 = vsel %vm531, %v1487, 0.0
      %v1536 = vsel %vm531, %v1488, 0.0
      %v1537 = vsel %vm531, %v1489, 0.0
      %v1538 = vld [vmem:[%s443] sm:$0xff]
      %v1539 = vld [vmem:[%s443 + $0x8] sm:$0xff]
      %v1540 = vld [vmem:[%s443 + $0x10] sm:$0xff]
      %v1541 = vld [vmem:[%s443 + $0x18] sm:$0xff]
      %v1542 = vld [vmem:[%s443 + $0x20] sm:$0xf]
      %v1543 = vld [vmem:[%s446] sm:$0x1]
      %v1572 = vrot.slane %v1506, 1
      %v1573 = vrot.slane %v1522, 1
      %v1574 = vsel %vm597, %v1572, %v1573
      %v1575 = vrot.slane %v1507, 1
      %v1576 = vrot.slane %v1523, 1
      %v1577 = vsel %vm597, %v1575, %v1576
      %v1578 = vrot.slane %v1508, 1
      %v1579 = vrot.slane %v1524, 1
      %v1580 = vsel %vm597, %v1578, %v1579
      %v1581 = vrot.slane %v1509, 1
      %v1582 = vrot.slane %v1525, 1
      %v1583 = vsel %vm597, %v1581, %v1582
      %v1584 = vrot.slane %v1510, 1
      %v1585 = vrot.slane %v1526, 1
      %v1586 = vsel %vm597, %v1584, %v1585
      %v1587 = vrot.slane %v1511, 1
      %v1588 = vrot.slane %v1527, 1
      %v1589 = vsel %vm597, %v1587, %v1588
      %v1590 = vrot.slane %v1512, 1
      %v1591 = vrot.slane %v1528, 1
      %v1592 = vsel %vm597, %v1590, %v1591
      %v1593 = vrot.slane %v1514, 1
      %v1594 = vrot.slane %v1530, 1
      %v1595 = vsel %vm597, %v1593, %v1594
      %v1596 = vrot.slane %v1515, 1
      %v1597 = vrot.slane %v1531, 1
      %v1598 = vsel %vm597, %v1596, %v1597
      %v1599 = vrot.slane %v1516, 1
      %v1600 = vrot.slane %v1532, 1
      %v1601 = vsel %vm597, %v1599, %v1600
      %v1602 = vrot.slane %v1517, 1
      %v1603 = vrot.slane %v1533, 1
      %v1604 = vsel %vm597, %v1602, %v1603
      %v1605 = vrot.slane %v1518, 1
      %v1606 = vrot.slane %v1534, 1
      %v1607 = vsel %vm597, %v1605, %v1606
      %v1608 = vrot.slane %v1519, 1
      %v1609 = vrot.slane %v1535, 1
      %v1610 = vsel %vm597, %v1608, %v1609
      %v1611 = vrot.slane %v1520, 1
      %v1612 = vrot.slane %v1536, 1
      %v1613 = vsel %vm597, %v1611, %v1612
      %v1614 = vrot.slane %v1506, 2
      %v1615 = vrot.slane %v1522, 2
      %v1616 = vsel %vm642, %v1614, %v1615
      %v1617 = vrot.slane %v1507, 2
      %v1618 = vrot.slane %v1523, 2
      %v1619 = vsel %vm642, %v1617, %v1618
      %v1620 = vrot.slane %v1508, 2
      %v1621 = vrot.slane %v1524, 2
      %v1622 = vsel %vm642, %v1620, %v1621
      %v1623 = vrot.slane %v1509, 2
      %v1624 = vrot.slane %v1525, 2
      %v1625 = vsel %vm642, %v1623, %v1624
      %v1626 = vrot.slane %v1510, 2
      %v1627 = vrot.slane %v1526, 2
      %v1628 = vsel %vm642, %v1626, %v1627
      %v1629 = vrot.slane %v1511, 2
      %v1630 = vrot.slane %v1527, 2
      %v1631 = vsel %vm642, %v1629, %v1630
      %v1632 = vrot.slane %v1512, 2
      %v1633 = vrot.slane %v1528, 2
      %v1634 = vsel %vm642, %v1632, %v1633
      %v1635 = vrot.slane %v1514, 2
      %v1636 = vrot.slane %v1530, 2
      %v1637 = vsel %vm642, %v1635, %v1636
      %v1638 = vrot.slane %v1515, 2
      %v1639 = vrot.slane %v1531, 2
      %v1640 = vsel %vm642, %v1638, %v1639
      %v1641 = vrot.slane %v1516, 2
      %v1642 = vrot.slane %v1532, 2
      %v1643 = vsel %vm642, %v1641, %v1642
      %v1644 = vrot.slane %v1517, 2
      %v1645 = vrot.slane %v1533, 2
      %v1646 = vsel %vm642, %v1644, %v1645
      %v1647 = vrot.slane %v1518, 2
      %v1648 = vrot.slane %v1534, 2
      %v1649 = vsel %vm642, %v1647, %v1648
      %v1650 = vrot.slane %v1519, 2
      %v1651 = vrot.slane %v1535, 2
      %v1652 = vsel %vm642, %v1650, %v1651
      %v1653 = vrot.slane %v1520, 2
      %v1654 = vrot.slane %v1536, 2
      %v1655 = vsel %vm642, %v1653, %v1654
      %v1660 = vrot.slane %v1513, 1
      %v1661 = vrot.slane %v1529, 1
      %v1662 = vsel %vm597, %v1660, %v1661
      %v1663 = vrot.slane %v1521, 1
      %v1664 = vrot.slane %v1537, 1
      %v1665 = vsel %vm597, %v1663, %v1664
      %v1666 = vrot.slane %v1513, 2
      %v1667 = vrot.slane %v1529, 2
      %v1668 = vsel %vm642, %v1666, %v1667
      %v1669 = vrot.slane %v1521, 2
      %v1670 = vrot.slane %v1537, 2
      %v1671 = vsel %vm642, %v1669, %v1670
      %1672 = vrot.lane.b32.xlu0 %v599, 4
      %v1673 = vpop.permute.xlu0 %1672
      %1674 = vrot.lane.b32.xlu0 %v1574, 4
      %v1675 = vpop.permute.xlu0 %1674
      %1676 = vrot.lane.b32.xlu0 %v1577, 4
      %v1677 = vpop.permute.xlu0 %1676
      %1678 = vrot.lane.b32.xlu0 %v1580, 4
      %v1679 = vpop.permute.xlu0 %1678
      %1680 = vrot.lane.b32.xlu0 %v1583, 4
      %v1681 = vpop.permute.xlu0 %1680
      %1682 = vrot.lane.b32.xlu0 %v1586, 4
      %v1683 = vpop.permute.xlu0 %1682
      %1684 = vrot.lane.b32.xlu0 %v1589, 4
      %v1685 = vpop.permute.xlu0 %1684
      %1686 = vrot.lane.b32.xlu0 %v1592, 4
      %v1687 = vpop.permute.xlu0 %1686
      %1688 = vrot.lane.b32.xlu0 %v1595, 4
      %v1689 = vpop.permute.xlu0 %1688
      %1690 = vrot.lane.b32.xlu0 %v1598, 4
      %v1691 = vpop.permute.xlu0 %1690
      %1692 = vrot.lane.b32.xlu0 %v1601, 4
      %v1693 = vpop.permute.xlu0 %1692
      %1694 = vrot.lane.b32.xlu0 %v1604, 4
      %v1695 = vpop.permute.xlu0 %1694
      %1696 = vrot.lane.b32.xlu0 %v1607, 4
      %v1697 = vpop.permute.xlu0 %1696
      %1698 = vrot.lane.b32.xlu0 %v1610, 4
      %v1699 = vpop.permute.xlu0 %1698
      %1700 = vrot.lane.b32.xlu0 %v1613, 4
      %v1701 = vpop.permute.xlu0 %1700
      %1717 = vrot.lane.b32.xlu0 %v644, 8
      %v1718 = vpop.permute.xlu0 %1717
      %1719 = vrot.lane.b32.xlu0 %v1616, 8
      %v1720 = vpop.permute.xlu0 %1719
      %1721 = vrot.lane.b32.xlu0 %v1619, 8
      %v1722 = vpop.permute.xlu0 %1721
      %1723 = vrot.lane.b32.xlu0 %v1622, 8
      %v1724 = vpop.permute.xlu0 %1723
      %1725 = vrot.lane.b32.xlu0 %v1625, 8
      %v1726 = vpop.permute.xlu0 %1725
      %1727 = vrot.lane.b32.xlu0 %v1628, 8
      %v1728 = vpop.permute.xlu0 %1727
      %1729 = vrot.lane.b32.xlu0 %v1631, 8
      %v1730 = vpop.permute.xlu0 %1729
      %1731 = vrot.lane.b32.xlu0 %v1634, 8
      %v1732 = vpop.permute.xlu0 %1731
      %1733 = vrot.lane.b32.xlu0 %v1637, 8
      %v1734 = vpop.permute.xlu0 %1733
      %1735 = vrot.lane.b32.xlu0 %v1640, 8
      %v1736 = vpop.permute.xlu0 %1735
      %1737 = vrot.lane.b32.xlu0 %v1643, 8
      %v1738 = vpop.permute.xlu0 %1737
      %1739 = vrot.lane.b32.xlu0 %v1646, 8
      %v1740 = vpop.permute.xlu0 %1739
      %1741 = vrot.lane.b32.xlu0 %v1649, 8
      %v1742 = vpop.permute.xlu0 %1741
      %1743 = vrot.lane.b32.xlu0 %v1652, 8
      %v1744 = vpop.permute.xlu0 %1743
      %1745 = vrot.lane.b32.xlu0 %v1655, 8
      %v1746 = vpop.permute.xlu0 %1745
      %1762 = vrot.lane.b32.xlu0 %v1506, 12
      %v1763 = vpop.permute.xlu0 %1762
      %1764 = vrot.lane.b32.xlu0 %v1507, 12
      %v1765 = vpop.permute.xlu0 %1764
      %1766 = vrot.lane.b32.xlu0 %v1508, 12
      %v1767 = vpop.permute.xlu0 %1766
      %1768 = vrot.lane.b32.xlu0 %v1509, 12
      %v1769 = vpop.permute.xlu0 %1768
      %1770 = vrot.lane.b32.xlu0 %v1510, 12
      %v1771 = vpop.permute.xlu0 %1770
      %1772 = vrot.lane.b32.xlu0 %v1511, 12
      %v1773 = vpop.permute.xlu0 %1772
      %1774 = vrot.lane.b32.xlu0 %v1512, 12
      %v1775 = vpop.permute.xlu0 %1774
      %1776 = vrot.lane.b32.xlu0 %v1513, 12
      %v1777 = vpop.permute.xlu0 %1776
      %1778 = vrot.lane.b32.xlu0 %v1514, 12
      %v1779 = vpop.permute.xlu0 %1778
      %1780 = vrot.lane.b32.xlu0 %v1515, 12
      %v1781 = vpop.permute.xlu0 %1780
      %1782 = vrot.lane.b32.xlu0 %v1516, 12
      %v1783 = vpop.permute.xlu0 %1782
      %1784 = vrot.lane.b32.xlu0 %v1517, 12
      %v1785 = vpop.permute.xlu0 %1784
      %1786 = vrot.lane.b32.xlu0 %v1518, 12
      %v1787 = vpop.permute.xlu0 %1786
      %1788 = vrot.lane.b32.xlu0 %v1519, 12
      %v1789 = vpop.permute.xlu0 %1788
      %1790 = vrot.lane.b32.xlu0 %v1520, 12
      %v1791 = vpop.permute.xlu0 %1790
      %1792 = vrot.lane.b32.xlu0 %v1521, 12
      %v1793 = vpop.permute.xlu0 %1792
      %1810 = vrot.lane.b32.xlu0 %v1574, 16
      %v1811 = vpop.permute.xlu0 %1810
      %1812 = vrot.lane.b32.xlu0 %v1577, 16
      %v1813 = vpop.permute.xlu0 %1812
      %1814 = vrot.lane.b32.xlu0 %v1580, 16
      %v1815 = vpop.permute.xlu0 %1814
      %1816 = vrot.lane.b32.xlu0 %v1583, 16
      %v1817 = vpop.permute.xlu0 %1816
      %1818 = vrot.lane.b32.xlu0 %v1586, 16
      %v1819 = vpop.permute.xlu0 %1818
      %1820 = vrot.lane.b32.xlu0 %v1589, 16
      %v1821 = vpop.permute.xlu0 %1820
      %1822 = vrot.lane.b32.xlu0 %v1592, 16
      %v1823 = vpop.permute.xlu0 %1822
      %1824 = vrot.lane.b32.xlu0 %v1662, 16
      %v1825 = vpop.permute.xlu0 %1824
      %1826 = vrot.lane.b32.xlu0 %v1595, 16
      %v1827 = vpop.permute.xlu0 %1826
      %1828 = vrot.lane.b32.xlu0 %v1598, 16
      %v1829 = vpop.permute.xlu0 %1828
      %1830 = vrot.lane.b32.xlu0 %v1601, 16
      %v1831 = vpop.permute.xlu0 %1830
      %1832 = vrot.lane.b32.xlu0 %v1604, 16
      %v1833 = vpop.permute.xlu0 %1832
      %1834 = vrot.lane.b32.xlu0 %v1607, 16
      %v1835 = vpop.permute.xlu0 %1834
      %1836 = vrot.lane.b32.xlu0 %v1610, 16
      %v1837 = vpop.permute.xlu0 %1836
      %1838 = vrot.lane.b32.xlu0 %v1613, 16
      %v1839 = vpop.permute.xlu0 %1838
      %1840 = vrot.lane.b32.xlu0 %v1665, 16
      %v1841 = vpop.permute.xlu0 %1840
      %1858 = vrot.lane.b32.xlu0 %v1616, 20
      %v1859 = vpop.permute.xlu0 %1858
      %1860 = vrot.lane.b32.xlu0 %v1619, 20
      %v1861 = vpop.permute.xlu0 %1860
      %1862 = vrot.lane.b32.xlu0 %v1622, 20
      %v1863 = vpop.permute.xlu0 %1862
      %1864 = vrot.lane.b32.xlu0 %v1625, 20
      %v1865 = vpop.permute.xlu0 %1864
      %1866 = vrot.lane.b32.xlu0 %v1628, 20
      %v1867 = vpop.permute.xlu0 %1866
      %1868 = vrot.lane.b32.xlu0 %v1631, 20
      %v1869 = vpop.permute.xlu0 %1868
      %1870 = vrot.lane.b32.xlu0 %v1634, 20
      %v1871 = vpop.permute.xlu0 %1870
      %1872 = vrot.lane.b32.xlu0 %v1668, 20
      %v1873 = vpop.permute.xlu0 %1872
      %1874 = vrot.lane.b32.xlu0 %v1637, 20
      %v1875 = vpop.permute.xlu0 %1874
      %1876 = vrot.lane.b32.xlu0 %v1640, 20
      %v1877 = vpop.permute.xlu0 %1876
      %1878 = vrot.lane.b32.xlu0 %v1643, 20
      %v1879 = vpop.permute.xlu0 %1878
      %1880 = vrot.lane.b32.xlu0 %v1646, 20
      %v1881 = vpop.permute.xlu0 %1880
      %1882 = vrot.lane.b32.xlu0 %v1649, 20
      %v1883 = vpop.permute.xlu0 %1882
      %1884 = vrot.lane.b32.xlu0 %v1652, 20
      %v1885 = vpop.permute.xlu0 %1884
      %1886 = vrot.lane.b32.xlu0 %v1655, 20
      %v1887 = vpop.permute.xlu0 %1886
      %1888 = vrot.lane.b32.xlu0 %v1671, 20
      %v1889 = vpop.permute.xlu0 %1888
      %1906 = vrot.lane.b32.xlu0 %v1507, 24
      %v1907 = vpop.permute.xlu0 %1906
      %1908 = vrot.lane.b32.xlu0 %v1508, 24
      %v1909 = vpop.permute.xlu0 %1908
      %1910 = vrot.lane.b32.xlu0 %v1509, 24
      %v1911 = vpop.permute.xlu0 %1910
      %1912 = vrot.lane.b32.xlu0 %v1510, 24
      %v1913 = vpop.permute.xlu0 %1912
      %1914 = vrot.lane.b32.xlu0 %v1511, 24
      %v1915 = vpop.permute.xlu0 %1914
      %1916 = vrot.lane.b32.xlu0 %v1512, 24
      %v1917 = vpop.permute.xlu0 %1916
      %1918 = vrot.lane.b32.xlu0 %v1513, 24
      %v1919 = vpop.permute.xlu0 %1918
      %1920 = vrot.lane.b32.xlu0 0.0, 24
      %v1921 = vpop.permute.xlu0 %1920
      %1922 = vrot.lane.b32.xlu0 %v1515, 24
      %v1923 = vpop.permute.xlu0 %1922
      %1924 = vrot.lane.b32.xlu0 %v1516, 24
      %v1925 = vpop.permute.xlu0 %1924
      %1926 = vrot.lane.b32.xlu0 %v1517, 24
      %v1927 = vpop.permute.xlu0 %1926
      %1928 = vrot.lane.b32.xlu0 %v1518, 24
      %v1929 = vpop.permute.xlu0 %1928
      %1930 = vrot.lane.b32.xlu0 %v1519, 24
      %v1931 = vpop.permute.xlu0 %1930
      %1932 = vrot.lane.b32.xlu0 %v1520, 24
      %v1933 = vpop.permute.xlu0 %1932
      %1934 = vrot.lane.b32.xlu0 %v1521, 24
      %v1935 = vpop.permute.xlu0 %1934
      %1951 = vrot.lane.b32.xlu0 %v1577, 28
      %v1952 = vpop.permute.xlu0 %1951
      %1953 = vrot.lane.b32.xlu0 %v1580, 28
      %v1954 = vpop.permute.xlu0 %1953
      %1955 = vrot.lane.b32.xlu0 %v1583, 28
      %v1956 = vpop.permute.xlu0 %1955
      %1957 = vrot.lane.b32.xlu0 %v1586, 28
      %v1958 = vpop.permute.xlu0 %1957
      %1959 = vrot.lane.b32.xlu0 %v1589, 28
      %v1960 = vpop.permute.xlu0 %1959
      %1961 = vrot.lane.b32.xlu0 %v1592, 28
      %v1962 = vpop.permute.xlu0 %1961
      %1963 = vrot.lane.b32.xlu0 %v1662, 28
      %v1964 = vpop.permute.xlu0 %1963
      %1965 = vrot.lane.b32.xlu0 %v599, 28
      %v1966 = vpop.permute.xlu0 %1965
      %1967 = vrot.lane.b32.xlu0 %v1598, 28
      %v1968 = vpop.permute.xlu0 %1967
      %1969 = vrot.lane.b32.xlu0 %v1601, 28
      %v1970 = vpop.permute.xlu0 %1969
      %1971 = vrot.lane.b32.xlu0 %v1604, 28
      %v1972 = vpop.permute.xlu0 %1971
      %1973 = vrot.lane.b32.xlu0 %v1607, 28
      %v1974 = vpop.permute.xlu0 %1973
      %1975 = vrot.lane.b32.xlu0 %v1610, 28
      %v1976 = vpop.permute.xlu0 %1975
      %1977 = vrot.lane.b32.xlu0 %v1613, 28
      %v1978 = vpop.permute.xlu0 %1977
      %1979 = vrot.lane.b32.xlu0 %v1665, 28
      %v1980 = vpop.permute.xlu0 %1979
      %1996 = vrot.lane.b32.xlu0 %v1619, 32
      %v1997 = vpop.permute.xlu0 %1996
      %1998 = vrot.lane.b32.xlu0 %v1622, 32
      %v1999 = vpop.permute.xlu0 %1998
      %2000 = vrot.lane.b32.xlu0 %v1625, 32
      %v2001 = vpop.permute.xlu0 %2000
      %2002 = vrot.lane.b32.xlu0 %v1628, 32
      %v2003 = vpop.permute.xlu0 %2002
      %2004 = vrot.lane.b32.xlu0 %v1631, 32
      %v2005 = vpop.permute.xlu0 %2004
      %2006 = vrot.lane.b32.xlu0 %v1634, 32
      %v2007 = vpop.permute.xlu0 %2006
      %2008 = vrot.lane.b32.xlu0 %v1668, 32
      %v2009 = vpop.permute.xlu0 %2008
      %2010 = vrot.lane.b32.xlu0 %v644, 32
      %v2011 = vpop.permute.xlu0 %2010
      %2012 = vrot.lane.b32.xlu0 %v1640, 32
      %v2013 = vpop.permute.xlu0 %2012
      %2014 = vrot.lane.b32.xlu0 %v1643, 32
      %v2015 = vpop.permute.xlu0 %2014
      %2016 = vrot.lane.b32.xlu0 %v1646, 32
      %v2017 = vpop.permute.xlu0 %2016
      %2018 = vrot.lane.b32.xlu0 %v1649, 32
      %v2019 = vpop.permute.xlu0 %2018
      %2020 = vrot.lane.b32.xlu0 %v1652, 32
      %v2021 = vpop.permute.xlu0 %2020
      %2022 = vrot.lane.b32.xlu0 %v1655, 32
      %v2023 = vpop.permute.xlu0 %2022
      %2024 = vrot.lane.b32.xlu0 %v1671, 32
      %v2025 = vpop.permute.xlu0 %2024
      %v2041 = vsel %vm1088, 0.0, %v1673
      %v2042 = vsel %vm1088, %v1506, %v1675
      %v2043 = vsel %vm1088, %v1507, %v1677
      %v2044 = vsel %vm1088, %v1508, %v1679
      %v2045 = vsel %vm1088, %v1509, %v1681
      %v2046 = vsel %vm1088, %v1510, %v1683
      %v2047 = vsel %vm1088, %v1511, %v1685
      %v2048 = vsel %vm1088, %v1512, %v1687
      %v2049 = vsel %vm1088, %v1514, %v1689
      %v2050 = vsel %vm1088, %v1515, %v1691
      %v2051 = vsel %vm1088, %v1516, %v1693
      %v2052 = vsel %vm1088, %v1517, %v1695
      %v2053 = vsel %vm1088, %v1518, %v1697
      %v2054 = vsel %vm1088, %v1519, %v1699
      %v2055 = vsel %vm1088, %v1520, %v1701
      %v2056 = vsel %vm1121, %v2041, %v1718
      %v2057 = vsel %vm1121, %v2042, %v1720
      %v2058 = vsel %vm1121, %v2043, %v1722
      %v2059 = vsel %vm1121, %v2044, %v1724
      %v2060 = vsel %vm1121, %v2045, %v1726
      %v2061 = vsel %vm1121, %v2046, %v1728
      %v2062 = vsel %vm1121, %v2047, %v1730
      %v2063 = vsel %vm1121, %v2048, %v1732
      %v2064 = vsel %vm1121, %v2049, %v1734
      %v2065 = vsel %vm1121, %v2050, %v1736
      %v2066 = vsel %vm1121, %v2051, %v1738
      %v2067 = vsel %vm1121, %v2052, %v1740
      %v2068 = vsel %vm1121, %v2053, %v1742
      %v2069 = vsel %vm1121, %v2054, %v1744
      %v2070 = vsel %vm1121, %v2055, %v1746
      %v2071 = vsel %vm1155, %v2056, %v1763
      %v2072 = vsel %vm1155, %v2057, %v1765
      %v2073 = vsel %vm1155, %v2058, %v1767
      %v2074 = vsel %vm1155, %v2059, %v1769
      %v2075 = vsel %vm1155, %v2060, %v1771
      %v2076 = vsel %vm1155, %v2061, %v1773
      %v2077 = vsel %vm1155, %v2062, %v1775
      %v2078 = vsel %vm1155, %v2063, %v1777
      %v2079 = vsel %vm1155, %v2056, %v1779
      %v2080 = vsel %vm1155, %v2064, %v1781
      %v2081 = vsel %vm1155, %v2065, %v1783
      %v2082 = vsel %vm1155, %v2066, %v1785
      %v2083 = vsel %vm1155, %v2067, %v1787
      %v2084 = vsel %vm1155, %v2068, %v1789
      %v2085 = vsel %vm1155, %v2069, %v1791
      %v2086 = vsel %vm1155, %v2070, %v1793
      %v2087 = vsel %vm1189, %v2071, %v1811
      %v2088 = vsel %vm1189, %v2072, %v1813
      %v2089 = vsel %vm1189, %v2073, %v1815
      %v2090 = vsel %vm1189, %v2074, %v1817
      %v2091 = vsel %vm1189, %v2075, %v1819
      %v2092 = vsel %vm1189, %v2076, %v1821
      %v2093 = vsel %vm1189, %v2077, %v1823
      %v2094 = vsel %vm1189, %v2078, %v1825
      %v2095 = vsel %vm1189, %v2079, %v1827
      %v2096 = vsel %vm1189, %v2080, %v1829
      %v2097 = vsel %vm1189, %v2081, %v1831
      %v2098 = vsel %vm1189, %v2082, %v1833
      %v2099 = vsel %vm1189, %v2083, %v1835
      %v2100 = vsel %vm1189, %v2084, %v1837
      %v2101 = vsel %vm1189, %v2085, %v1839
      %v2102 = vsel %vm1189, %v2086, %v1841
      %vm2103 = vcmask 162816
      %v2104 = vsel %vm2103, %v2087, %v1859
      %v2105 = vsel %vm2103, %v2088, %v1861
      %v2106 = vsel %vm2103, %v2089, %v1863
      %v2107 = vsel %vm2103, %v2090, %v1865
      %v2108 = vsel %vm2103, %v2091, %v1867
      %v2109 = vsel %vm2103, %v2092, %v1869
      %v2110 = vsel %vm2103, %v2093, %v1871
      %v2111 = vsel %vm2103, %v2094, %v1873
      %v2112 = vsel %vm2103, %v2095, %v1875
      %v2113 = vsel %vm2103, %v2096, %v1877
      %v2114 = vsel %vm2103, %v2097, %v1879
      %v2115 = vsel %vm2103, %v2098, %v1881
      %v2116 = vsel %vm2103, %v2099, %v1883
      %v2117 = vsel %vm2103, %v2100, %v1885
      %v2118 = vsel %vm2103, %v2101, %v1887
      %v2119 = vsel %vm2103, %v2102, %v1889
      %vm2120 = vcmask 195584
      %v2121 = vsel %vm2120, %v2104, %v1907
      %v2122 = vsel %vm2120, %v2105, %v1909
      %v2123 = vsel %vm2120, %v2106, %v1911
      %v2124 = vsel %vm2120, %v2107, %v1913
      %v2125 = vsel %vm2120, %v2108, %v1915
      %v2126 = vsel %vm2120, %v2109, %v1917
      %v2127 = vsel %vm2120, %v2110, %v1919
      %v2128 = vsel %vm2120, %v2111, %v1921
      %v2129 = vsel %vm2120, %v2112, %v1923
      %v2130 = vsel %vm2120, %v2113, %v1925
      %v2131 = vsel %vm2120, %v2114, %v1927
      %v2132 = vsel %vm2120, %v2115, %v1929
      %v2133 = vsel %vm2120, %v2116, %v1931
      %v2134 = vsel %vm2120, %v2117, %v1933
      %v2135 = vsel %vm2120, %v2118, %v1935
      %v2136 = vsel %vm2120, %v2119, %v1921
      %vm2137 = vcmask 228352
      %v2138 = vsel %vm2137, %v2121, %v1952
      %v2139 = vsel %vm2137, %v2122, %v1954
      %v2140 = vsel %vm2137, %v2123, %v1956
      %v2141 = vsel %vm2137, %v2124, %v1958
      %v2142 = vsel %vm2137, %v2125, %v1960
      %v2143 = vsel %vm2137, %v2126, %v1962
      %v2144 = vsel %vm2137, %v2127, %v1964
      %v2145 = vsel %vm2137, %v2128, %v1966
      %v2146 = vsel %vm2137, %v2129, %v1968
      %v2147 = vsel %vm2137, %v2130, %v1970
      %v2148 = vsel %vm2137, %v2131, %v1972
      %v2149 = vsel %vm2137, %v2132, %v1974
      %v2150 = vsel %vm2137, %v2133, %v1976
      %v2151 = vsel %vm2137, %v2134, %v1978
      %v2152 = vsel %vm2137, %v2135, %v1980
      %v2153 = vsel %vm2137, %v2136, %v1966
      %vm2154 = vcmask 261120
      %v2155 = vsel %vm2154, %v2138, %v1997
      %v2156 = vsel %vm2154, %v2139, %v1999
      %v2157 = vsel %vm2154, %v2140, %v2001
      %v2158 = vsel %vm2154, %v2141, %v2003
      %v2159 = vsel %vm2154, %v2142, %v2005
      %v2160 = vsel %vm2154, %v2143, %v2007
      %v2161 = vsel %vm2154, %v2144, %v2009
      %v2162 = vsel %vm2154, %v2145, %v2011
      %v2163 = vsel %vm2154, %v2146, %v2013
      %v2164 = vsel %vm2154, %v2147, %v2015
      %v2165 = vsel %vm2154, %v2148, %v2017
      %v2166 = vsel %vm2154, %v2149, %v2019
      %v2167 = vsel %vm2154, %v2150, %v2021
      %v2168 = vsel %vm2154, %v2151, %v2023
      %v2169 = vsel %vm2154, %v2152, %v2025
      %v2170 = vsel %vm2154, %v2153, %v2011
      %v2172 = vlaneseq
      %v2173 = vshrl.u32 %v2172, 7
      %v2174 = vsub.s32 0, %v2173
      %v2175 = vrot.slane %v1543, %v2174
      %vm2177 = vcmask 293888
      %v2179 = vsel %vm2177, %v2155, 0
      %v2182 = vsel %vm2177, %v2156, 0
      %v2185 = vsel %vm2177, %v2157, 0
      %v2188 = vsel %vm2177, %v2158, 0
      %v2191 = vsel %vm2177, %v2159, 0
      %v2194 = vsel %vm2177, %v2160, 0
      %v2197 = vsel %vm2177, %v2161, 0
      %v2200 = vsel %vm2177, %v2162, 0
      %v2203 = vsel %vm2177, %v2163, 0
      %v2206 = vsel %vm2177, %v2164, 0
      %v2209 = vsel %vm2177, %v2165, 0
      %v2212 = vsel %vm2177, %v2166, 0
      %v2215 = vsel %vm2177, %v2167, 0
      %v2218 = vsel %vm2177, %v2168, 0
      %v2221 = vsel %vm2177, %v2169, 0
      %v2224 = vsel %vm2177, %v2170, 0
      %vm2226 = vcmask 1043456
      %v2228 = vsel %vm2226, %v1542, 0
      %2230 = vmatprep.subr.mxu0 0.0
      %2231 = vmatpush1.msra.mxu0 %v1538
      %2232 = vmatprep.subr.mxu0 0.0
      %2233 = vmatpush1.msra.mxu0 %v1539
      %2234 = vmatprep.subr.mxu0 0.0
      %2235 = vmatpush1.msra.mxu0 %v1540
      %2236 = vmatprep.subr.mxu0 0.0
      %2237 = vmatpush1.msra.mxu0 %v1541
      %2238 = vmatprep.subr.mxu0 0.0
      %2239 = vmatpush1.msra.mxu0 %v2228
      %2240 = vmatprep.subr.mxu0 0.0
      %2241 = vmatpush1.msra.mxu0 0.0
      %2242 = vmatprep.subr.mxu0 0.0
      %2243 = vmatpush1.msra.mxu0 0.0
      %2244 = vmatprep.subr.mxu0 0.0
      %2245 = vmatpush1.msra.mxu0 0.0
      %2246 = vmatprep.subr.mxu0 0.0
      %2247 = vmatpush1.msra.mxu0 0.0
      %2248 = vmatprep.subr.mxu0 0.0
      %2249 = vmatpush1.msra.mxu0 0.0
      %2250 = vmatprep.subr.mxu0 0.0
      %2251 = vmatpush1.msra.mxu0 0.0
      %2252 = vmatprep.subr.mxu0 0.0
      %2253 = vmatpush1.msra.mxu0 0.0
      %2254 = vmatprep.subr.mxu0 0.0
      %2255 = vmatpush1.msra.mxu0 0.0
      %2256 = vmatprep.subr.mxu0 0.0
      %2257 = vmatpush1.msra.mxu0 0.0
      %2258 = vmatprep.subr.mxu0 0.0
      %2259 = vmatpush1.msra.mxu0 0.0
      %2260 = vmatprep.subr.mxu0 0.0
      %2261 = vmatpush1.msra.mxu0 0.0
      %2262 = vmatprep.subr.mxu0 0.0
      %2263 = vmatpush1.msra.mxu0 0.0
      %2264 = vmatprep.subr.mxu0 0.0
      %2265 = vmatpush1.msra.mxu0 0.0
      %2266 = vmatprep.subr.mxu0 0.0
      %2267 = vmatpush1.msra.mxu0 0.0
      %2268 = vmatprep.subr.mxu0 0.0
      %2269 = vmatpush1.msra.mxu0 0.0
      %2270 = vmatprep.subr.mxu0 0.0
      %2271 = vmatpush1.msra.mxu0 0.0
      %2272 = vmatprep.subr.mxu0 0.0
      %2273 = vmatpush1.msra.mxu0 0.0
      %2274 = vmatprep.subr.mxu0 0.0
      %2275 = vmatpush1.msra.mxu0 0.0
      %2276 = vmatprep.subr.mxu0 0.0
      %2277 = vmatpush1.msra.mxu0 0.0
      %2278 = vmatprep.subr.mxu0 0.0
      %2279 = vmatpush1.msra.mxu0 0.0
      %2280 = vmatprep.subr.mxu0 0.0
      %2281 = vmatpush1.msra.mxu0 0.0
      %2282 = vmatprep.subr.mxu0 0.0
      %2283 = vmatpush1.msra.mxu0 0.0
      %2284 = vmatprep.subr.mxu0 0.0
      %2285 = vmatpush1.msra.mxu0 0.0
      %2286 = vmatprep.subr.mxu0 0.0
      %2287 = vmatpush1.msra.mxu0 0.0
      %2288 = vmatprep.subr.mxu0 0.0
      %2289 = vmatpush1.msra.mxu0 0.0
      %2290 = vmatprep.subr.mxu0 0.0
      %2291 = vmatpush1.msra.mxu0 0.0
      %2292 = vmatprep.subr.mxu0 0.0
      %2293 = vmatpush1.msra.mxu0 0.0
      %2294 = vmatprep.mubr.f32.mxu0 0.0
      %2295 = vmatmul.mubr.f32.gmra.mrb[0].mxu0 %v2179
      %v2296 = vpop.f32.mrb[0].mxu0
      %v2297 = vadd.f32 %v2175, %v2296
      %v2298 = vpop.f32.mrb[0].mxu0
      %2299 = vmatprep.mubr.f32.mxu0 0.0
      %2300 = vmatmul.mubr.f32.gmra.mrb[0].mxu0 %v2182
      %v2301 = vpop.f32.mrb[0].mxu0
      %v2302 = vadd.f32 %v2175, %v2301
      %v2303 = vpop.f32.mrb[0].mxu0
      %2304 = vmatprep.mubr.f32.mxu0 0.0
      %2305 = vmatmul.mubr.f32.gmra.mrb[0].mxu0 %v2185
      %v2306 = vpop.f32.mrb[0].mxu0
      %v2307 = vadd.f32 %v2175, %v2306
      %v2308 = vpop.f32.mrb[0].mxu0
      %2309 = vmatprep.mubr.f32.mxu0 0.0
      %2310 = vmatmul.mubr.f32.gmra.mrb[0].mxu0 %v2188
      %v2311 = vpop.f32.mrb[0].mxu0
      %v2312 = vadd.f32 %v2175, %v2311
      %v2313 = vpop.f32.mrb[0].mxu0
      %2314 = vmatprep.mubr.f32.mxu0 0.0
      %2315 = vmatmul.mubr.f32.gmra.mrb[0].mxu0 %v2191
      %v2316 = vpop.f32.mrb[0].mxu0
      %v2317 = vadd.f32 %v2175, %v2316
      %v2318 = vpop.f32.mrb[0].mxu0
      %2319 = vmatprep.mubr.f32.mxu0 0.0
      %2320 = vmatmul.mubr.f32.gmra.mrb[0].mxu0 %v2194
      %v2321 = vpop.f32.mrb[0].mxu0
      %v2322 = vadd.f32 %v2175, %v2321
      %v2323 = vpop.f32.mrb[0].mxu0
      %2324 = vmatprep.mubr.f32.mxu0 0.0
      %2325 = vmatmul.mubr.f32.gmra.mrb[0].mxu0 %v2197
      %v2326 = vpop.f32.mrb[0].mxu0
      %v2327 = vadd.f32 %v2175, %v2326
      %v2328 = vpop.f32.mrb[0].mxu0
      %2329 = vmatprep.mubr.f32.mxu0 0.0
      %2330 = vmatmul.mubr.f32.gmra.mrb[0].mxu0 %v2200
      %v2331 = vpop.f32.mrb[0].mxu0
      %v2332 = vadd.f32 %v2175, %v2331
      %v2333 = vpop.f32.mrb[0].mxu0
      %2334 = vmatprep.mubr.f32.mxu0 0.0
      %2335 = vmatmul.mubr.f32.gmra.mrb[0].mxu0 %v2203
      %v2336 = vpop.f32.mrb[0].mxu0
      %v2337 = vadd.f32 %v2175, %v2336
      %v2338 = vpop.f32.mrb[0].mxu0
      %2339 = vmatprep.mubr.f32.mxu0 0.0
      %2340 = vmatmul.mubr.f32.gmra.mrb[0].mxu0 %v2206
      %v2341 = vpop.f32.mrb[0].mxu0
      %v2342 = vadd.f32 %v2175, %v2341
      %v2343 = vpop.f32.mrb[0].mxu0
      %2344 = vmatprep.mubr.f32.mxu0 0.0
      %2345 = vmatmul.mubr.f32.gmra.mrb[0].mxu0 %v2209
      %v2346 = vpop.f32.mrb[0].mxu0
      %v2347 = vadd.f32 %v2175, %v2346
      %v2348 = vpop.f32.mrb[0].mxu0
      %2349 = vmatprep.mubr.f32.mxu0 0.0
      %2350 = vmatmul.mubr.f32.gmra.mrb[0].mxu0 %v2212
      %v2351 = vpop.f32.mrb[0].mxu0
      %v2352 = vadd.f32 %v2175, %v2351
      %v2353 = vpop.f32.mrb[0].mxu0
      %2354 = vmatprep.mubr.f32.mxu0 0.0
      %2355 = vmatmul.mubr.f32.gmra.mrb[0].mxu0 %v2215
      %v2356 = vpop.f32.mrb[0].mxu0
      %v2357 = vadd.f32 %v2175, %v2356
      %v2358 = vpop.f32.mrb[0].mxu0
      %2359 = vmatprep.mubr.f32.mxu0 0.0
      %2360 = vmatmul.mubr.f32.gmra.mrb[0].mxu0 %v2218
      %v2361 = vpop.f32.mrb[0].mxu0
      %v2362 = vadd.f32 %v2175, %v2361
      %v2363 = vpop.f32.mrb[0].mxu0
      %2364 = vmatprep.mubr.f32.mxu0 0.0
      %2365 = vmatmul.mubr.f32.gmra.mrb[0].mxu0 %v2221
      %v2366 = vpop.f32.mrb[0].mxu0
      %v2367 = vadd.f32 %v2175, %v2366
      %v2368 = vpop.f32.mrb[0].mxu0
      %2369 = vmatprep.mubr.f32.mxu0 0.0
      %2370 = vmatmul.mubr.f32.gmra.mrb[0].mxu0 %v2224
      %v2371 = vpop.f32.mrb[0].mxu0
      %v2372 = vadd.f32 %v2175, %v2371
      %v2373 = vpop.f32.mrb[0].mxu0
      %2374 = vdwg.mxu0
      %vm2375 = vcmp.ge.f32.partialorder %v2297, 0.0
      %vm2376 = vcmp.ge.f32.partialorder %v2302, 0.0
      %vm2377 = vcmp.ge.f32.partialorder %v2307, 0.0
      %vm2378 = vcmp.ge.f32.partialorder %v2312, 0.0
      %vm2379 = vcmp.ge.f32.partialorder %v2317, 0.0
      %vm2380 = vcmp.ge.f32.partialorder %v2322, 0.0
      %vm2381 = vcmp.ge.f32.partialorder %v2327, 0.0
      %vm2382 = vcmp.ge.f32.partialorder %v2332, 0.0
      %vm2383 = vcmp.ge.f32.partialorder %v2337, 0.0
      %vm2384 = vcmp.ge.f32.partialorder %v2342, 0.0
      %vm2385 = vcmp.ge.f32.partialorder %v2347, 0.0
      %vm2386 = vcmp.ge.f32.partialorder %v2352, 0.0
      %vm2387 = vcmp.ge.f32.partialorder %v2357, 0.0
      %vm2388 = vcmp.ge.f32.partialorder %v2362, 0.0
      %vm2389 = vcmp.ge.f32.partialorder %v2367, 0.0
      %vm2390 = vcmp.ge.f32.partialorder %v2372, 0.0
      %v2391 = vmul.f32 %v2297, 0.01
      %v2392 = vmul.f32 %v2302, 0.01
      %v2393 = vmul.f32 %v2307, 0.01
      %v2394 = vmul.f32 %v2312, 0.01
      %v2395 = vmul.f32 %v2317, 0.01
      %v2396 = vmul.f32 %v2322, 0.01
      %v2397 = vmul.f32 %v2327, 0.01
      %v2398 = vmul.f32 %v2332, 0.01
      %v2399 = vmul.f32 %v2337, 0.01
      %v2400 = vmul.f32 %v2342, 0.01
      %v2401 = vmul.f32 %v2347, 0.01
      %v2402 = vmul.f32 %v2352, 0.01
      %v2403 = vmul.f32 %v2357, 0.01
      %v2404 = vmul.f32 %v2362, 0.01
      %v2405 = vmul.f32 %v2367, 0.01
      %v2406 = vmul.f32 %v2372, 0.01
      %v2407 = vsel %vm2375, %v2297, %v2391
      %v2408 = vsel %vm2376, %v2302, %v2392
      %v2409 = vsel %vm2377, %v2307, %v2393
      %v2410 = vsel %vm2378, %v2312, %v2394
      %v2411 = vsel %vm2379, %v2317, %v2395
      %v2412 = vsel %vm2380, %v2322, %v2396
      %v2413 = vsel %vm2381, %v2327, %v2397
      %v2414 = vsel %vm2382, %v2332, %v2398
      %v2415 = vsel %vm2383, %v2337, %v2399
      %v2416 = vsel %vm2384, %v2342, %v2400
      %v2417 = vsel %vm2385, %v2347, %v2401
      %v2418 = vsel %vm2386, %v2352, %v2402
      %v2419 = vsel %vm2387, %v2357, %v2403
      %v2420 = vsel %vm2388, %v2362, %v2404
      %v2421 = vsel %vm2389, %v2367, %v2405
      %v2422 = vsel %vm2390, %v2372, %v2406
      %2423 = vxpose.xlu0.b32.start [1/16] %v2407, 128
      %2424 = vxpose.xlu0.b32.cont [2/16] %v2408, 128
      %2425 = vxpose.xlu0.b32.cont [3/16] %v2409, 128
      %2426 = vxpose.xlu0.b32.cont [4/16] %v2410, 128
      %2427 = vxpose.xlu0.b32.cont [5/16] %v2411, 128
      %2428 = vxpose.xlu0.b32.cont [6/16] %v2412, 128
      %2429 = vxpose.xlu0.b32.cont [7/16] %v2413, 128
      %2430 = vxpose.xlu0.b32.cont [8/16] %v2414, 128
      %2431 = vxpose.xlu0.b32.cont [9/16] %v2415, 128
      %2432 = vxpose.xlu0.b32.cont [10/16] %v2416, 128
      %2433 = vxpose.xlu0.b32.cont [11/16] %v2417, 128
      %2434 = vxpose.xlu0.b32.cont [12/16] %v2418, 128
      %2435 = vxpose.xlu0.b32.cont [13/16] %v2419, 128
      %2436 = vxpose.xlu0.b32.cont [14/16] %v2420, 128
      %2437 = vxpose.xlu0.b32.cont [15/16] %v2421, 128
      %2438 = vxpose.xlu0.b32.end [16/16] %v2422, 128
      %v2439 = vpop.trf.xlu0
      %v2440 = vpop.trf.xlu0
      %v2441 = vpop.trf.xlu0
      %v2442 = vpop.trf.xlu0
      %v2443 = vpop.trf.xlu0
      %v2444 = vpop.trf.xlu0
      %v2445 = vpop.trf.xlu0
      %v2446 = vpop.trf.xlu0
      %v2447 = vpop.trf.xlu0
      %v2448 = vpop.trf.xlu0
      %v2449 = vpop.trf.xlu0
      %v2450 = vpop.trf.xlu0
      %v2451 = vpop.trf.xlu0
      %v2452 = vpop.trf.xlu0
      %v2453 = vpop.trf.xlu0
      %v2454 = vpop.trf.xlu0
      %v2456 = vrot.slane %v2439, 7
      %2457 = vrot.lane.b32.xlu0 %v2456, 64
      %v2458 = vpop.permute.xlu0 %2457
      %v2460 = vsel %vm531, %v2439, %v2458
      %v2461 = vrot.slane %v2439, 1
      %2463 = vrot.lane.b32.xlu0 %v2439, 64
      %v2464 = vpop.permute.xlu0 %2463
      %v2466 = vsel %vm531, %v2461, %v2464
      %v2467 = vrot.slane %v2439, 2
      %2469 = vrot.lane.b32.xlu0 %v2461, 64
      %v2470 = vpop.permute.xlu0 %2469
      %v2472 = vsel %vm531, %v2467, %v2470
      %v2473 = vrot.slane %v2439, 3
      %2475 = vrot.lane.b32.xlu0 %v2467, 64
      %v2476 = vpop.permute.xlu0 %2475
      %v2478 = vsel %vm531, %v2473, %v2476
      %2480 = vrot.lane.b32.xlu0 %v2466, 64
      %v2481 = vpop.permute.xlu0 %2480
      %2484 = vrot.lane.b32.xlu0 %v2478, 64
      %v2485 = vpop.permute.xlu0 %2484
      %vm2487 = vcmask 523264
      %v2488 = vsel %vm2487, %v2460, %v2481
      %v2489 = vsel %vm2487, %v2472, %v2485
      %v2490 = vld [vmem:[%s451] sm:$0xff]
      %v2491 = vld [vmem:[%s451 + $0x8] sm:$0xff]
      %v2492 = vld [vmem:[%s451 + $0x10] sm:$0xff]
      %v2493 = vld [vmem:[%s451 + $0x18] sm:$0xff]
      %v2494 = vld [vmem:[%s451 + $0x20] sm:$0xff]
      %v2495 = vld [vmem:[%s451 + $0x28] sm:$0xff]
      %v2496 = vld [vmem:[%s451 + $0x30] sm:$0xff]
      %v2497 = vld [vmem:[%s451 + $0x38] sm:$0xff]
      %v2498 = vld [vmem:[%s451 + $0x40] sm:$0xff]
      %v2499 = vld [vmem:[%s451 + $0x48] sm:$0xff]
      %v2500 = vld [vmem:[%s451 + $0x50] sm:$0xff]
      %v2501 = vld [vmem:[%s451 + $0x58] sm:$0xff]
      %v2502 = vld [vmem:[%s451 + $0x60] sm:$0xff]
      %v2503 = vld [vmem:[%s451 + $0x68] sm:$0xff]
      %v2504 = vld [vmem:[%s451 + $0x70] sm:$0xff]
      %v2505 = vld [vmem:[%s451 + $0x78] sm:$0xff]
      %v2506 = vld [vmem:[%s451 + $0x80] sm:$0xff]
      %v2507 = vld [vmem:[%s451 + $0x88] sm:$0xff]
      %v2508 = vld [vmem:[%s451 + $0x90] sm:$0xff]
      %v2509 = vld [vmem:[%s451 + $0x98] sm:$0xff]
      %v2510 = vld [vmem:[%s451 + $0xa0] sm:$0xff]
      %v2511 = vld [vmem:[%s451 + $0xa8] sm:$0xff]
      %v2512 = vld [vmem:[%s451 + $0xb0] sm:$0xff]
      %v2513 = vld [vmem:[%s451 + $0xb8] sm:$0xff]
      %v2514 = vld [vmem:[%s451 + $0xc0] sm:$0xff]
      %v2515 = vld [vmem:[%s451 + $0xc8] sm:$0xff]
      %v2516 = vld [vmem:[%s451 + $0xd0] sm:$0xff]
      %v2517 = vld [vmem:[%s451 + $0xd8] sm:$0xff]
      %v2518 = vld [vmem:[%s451 + $0xe0] sm:$0xff]
      %v2519 = vld [vmem:[%s451 + $0xe8] sm:$0xff]
      %v2520 = vld [vmem:[%s451 + $0xf0] sm:$0xff]
      %v2521 = vld [vmem:[%s451 + $0xf8] sm:$0xff]
      %v2522 = vld [vmem:[%s454] sm:$0x1]
      %v2524 = vlaneseq
      %v2525 = vshrl.u32 %v2524, 7
      %v2526 = vsub.s32 0, %v2525
      %v2527 = vrot.slane %v2522, %v2526
      %2529 = vmatprep.subr.mxu0 0.0
      %2530 = vmatpush1.msra.mxu0 %v2490
      %2531 = vmatprep.subr.mxu0 0.0
      %2532 = vmatpush1.msra.mxu0 %v2491
      %2533 = vmatprep.subr.mxu0 0.0
      %2534 = vmatpush1.msra.mxu0 %v2492
      %2535 = vmatprep.subr.mxu0 0.0
      %2536 = vmatpush1.msra.mxu0 %v2493
      %2537 = vmatprep.subr.mxu0 0.0
      %2538 = vmatpush1.msra.mxu0 %v2494
      %2539 = vmatprep.subr.mxu0 0.0
      %2540 = vmatpush1.msra.mxu0 %v2495
      %2541 = vmatprep.subr.mxu0 0.0
      %2542 = vmatpush1.msra.mxu0 %v2496
      %2543 = vmatprep.subr.mxu0 0.0
      %2544 = vmatpush1.msra.mxu0 %v2497
      %2545 = vmatprep.subr.mxu0 0.0
      %2546 = vmatpush1.msra.mxu0 %v2498
      %2547 = vmatprep.subr.mxu0 0.0
      %2548 = vmatpush1.msra.mxu0 %v2499
      %2549 = vmatprep.subr.mxu0 0.0
      %2550 = vmatpush1.msra.mxu0 %v2500
      %2551 = vmatprep.subr.mxu0 0.0
      %2552 = vmatpush1.msra.mxu0 %v2501
      %2553 = vmatprep.subr.mxu0 0.0
      %2554 = vmatpush1.msra.mxu0 %v2502
      %2555 = vmatprep.subr.mxu0 0.0
      %2556 = vmatpush1.msra.mxu0 %v2503
      %2557 = vmatprep.subr.mxu0 0.0
      %2558 = vmatpush1.msra.mxu0 %v2504
      %2559 = vmatprep.subr.mxu0 0.0
      %2560 = vmatpush1.msra.mxu0 %v2505
      %2561 = vmatprep.subr.mxu0 0.0
      %2562 = vmatpush1.msra.mxu0 %v2506
      %2563 = vmatprep.subr.mxu0 0.0
      %2564 = vmatpush1.msra.mxu0 %v2507
      %2565 = vmatprep.subr.mxu0 0.0
      %2566 = vmatpush1.msra.mxu0 %v2508
      %2567 = vmatprep.subr.mxu0 0.0
      %2568 = vmatpush1.msra.mxu0 %v2509
      %2569 = vmatprep.subr.mxu0 0.0
      %2570 = vmatpush1.msra.mxu0 %v2510
      %2571 = vmatprep.subr.mxu0 0.0
      %2572 = vmatpush1.msra.mxu0 %v2511
      %2573 = vmatprep.subr.mxu0 0.0
      %2574 = vmatpush1.msra.mxu0 %v2512
      %2575 = vmatprep.subr.mxu0 0.0
      %2576 = vmatpush1.msra.mxu0 %v2513
      %2577 = vmatprep.subr.mxu0 0.0
      %2578 = vmatpush1.msra.mxu0 %v2514
      %2579 = vmatprep.subr.mxu0 0.0
      %2580 = vmatpush1.msra.mxu0 %v2515
      %2581 = vmatprep.subr.mxu0 0.0
      %2582 = vmatpush1.msra.mxu0 %v2516
      %2583 = vmatprep.subr.mxu0 0.0
      %2584 = vmatpush1.msra.mxu0 %v2517
      %2585 = vmatprep.subr.mxu0 0.0
      %2586 = vmatpush1.msra.mxu0 %v2518
      %2587 = vmatprep.subr.mxu0 0.0
      %2588 = vmatpush1.msra.mxu0 %v2519
      %2589 = vmatprep.subr.mxu0 0.0
      %2590 = vmatpush1.msra.mxu0 %v2520
      %2591 = vmatprep.subr.mxu0 0.0
      %2592 = vmatpush1.msra.mxu0 %v2521
      %2593 = vmatprep.mubr.f32.mxu0 %v2489
      %2594 = vmatmul.mubr.f32.gmra.mrb[0].mxu0 %v2488
      %v2595 = vpop.f32.mrb[0].mxu0
      %v2596 = vadd.f32 %v2527, %v2595
      %v2597 = vpop.f32.mrb[0].mxu0
      %2598 = vdwg.mxu0
      %vm2599 = vcmp.ge.f32.partialorder %v2596, 0.0
      %v2600 = vmul.f32 %v2596, 0.01
      %v2601 = vsel %vm2599, %v2596, %v2600
      %v2602 = vld [vmem:[%s459] sm:$0xff]
      %v2603 = vld [vmem:[%s459 + $0x8] sm:$0xff]
      %v2604 = vld [vmem:[%s459 + $0x10] sm:$0xff]
      %v2605 = vld [vmem:[%s459 + $0x18] sm:$0xff]
      %v2606 = vld [vmem:[%s462] sm:$0x1]
      %v2608 = vlaneseq
      %v2609 = vshrl.u32 %v2608, 7
      %v2610 = vsub.s32 0, %v2609
      %v2611 = vrot.slane %v2606, %v2610
      %v2614 = vsel %vm2154, %v2601, 0
      %2616 = vmatprep.subr.mxu0 0.0
      %2617 = vmatpush1.msra.mxu0 %v2602
      %2618 = vmatprep.subr.mxu0 0.0
      %2619 = vmatpush1.msra.mxu0 %v2603
      %2620 = vmatprep.subr.mxu0 0.0
      %2621 = vmatpush1.msra.mxu0 %v2604
      %2622 = vmatprep.subr.mxu0 0.0
      %2623 = vmatpush1.msra.mxu0 %v2605
      %2624 = vmatprep.subr.mxu0 0.0
      %2625 = vmatpush1.msra.mxu0 0.0
      %2626 = vmatprep.subr.mxu0 0.0
      %2627 = vmatpush1.msra.mxu0 0.0
      %2628 = vmatprep.subr.mxu0 0.0
      %2629 = vmatpush1.msra.mxu0 0.0
      %2630 = vmatprep.subr.mxu0 0.0
      %2631 = vmatpush1.msra.mxu0 0.0
      %2632 = vmatprep.subr.mxu0 0.0
      %2633 = vmatpush1.msra.mxu0 0.0
      %2634 = vmatprep.subr.mxu0 0.0
      %2635 = vmatpush1.msra.mxu0 0.0
      %2636 = vmatprep.subr.mxu0 0.0
      %2637 = vmatpush1.msra.mxu0 0.0
      %2638 = vmatprep.subr.mxu0 0.0
      %2639 = vmatpush1.msra.mxu0 0.0
      %2640 = vmatprep.subr.mxu0 0.0
      %2641 = vmatpush1.msra.mxu0 0.0
      %2642 = vmatprep.subr.mxu0 0.0
      %2643 = vmatpush1.msra.mxu0 0.0
      %2644 = vmatprep.subr.mxu0 0.0
      %2645 = vmatpush1.msra.mxu0 0.0
      %2646 = vmatprep.subr.mxu0 0.0
      %2647 = vmatpush1.msra.mxu0 0.0
      %2648 = vmatprep.subr.mxu0 0.0
      %2649 = vmatpush1.msra.mxu0 0.0
      %2650 = vmatprep.subr.mxu0 0.0
      %2651 = vmatpush1.msra.mxu0 0.0
      %2652 = vmatprep.subr.mxu0 0.0
      %2653 = vmatpush1.msra.mxu0 0.0
      %2654 = vmatprep.subr.mxu0 0.0
      %2655 = vmatpush1.msra.mxu0 0.0
      %2656 = vmatprep.subr.mxu0 0.0
      %2657 = vmatpush1.msra.mxu0 0.0
      %2658 = vmatprep.subr.mxu0 0.0
      %2659 = vmatpush1.msra.mxu0 0.0
      %2660 = vmatprep.subr.mxu0 0.0
      %2661 = vmatpush1.msra.mxu0 0.0
      %2662 = vmatprep.subr.mxu0 0.0
      %2663 = vmatpush1.msra.mxu0 0.0
      %2664 = vmatprep.subr.mxu0 0.0
      %2665 = vmatpush1.msra.mxu0 0.0
      %2666 = vmatprep.subr.mxu0 0.0
      %2667 = vmatpush1.msra.mxu0 0.0
      %2668 = vmatprep.subr.mxu0 0.0
      %2669 = vmatpush1.msra.mxu0 0.0
      %2670 = vmatprep.subr.mxu0 0.0
      %2671 = vmatpush1.msra.mxu0 0.0
      %2672 = vmatprep.subr.mxu0 0.0
      %2673 = vmatpush1.msra.mxu0 0.0
      %2674 = vmatprep.subr.mxu0 0.0
      %2675 = vmatpush1.msra.mxu0 0.0
      %2676 = vmatprep.subr.mxu0 0.0
      %2677 = vmatpush1.msra.mxu0 0.0
      %2678 = vmatprep.subr.mxu0 0.0
      %2679 = vmatpush1.msra.mxu0 0.0
      %2680 = vmatprep.mubr.f32.mxu0 0.0
      %2681 = vmatmul.mubr.f32.gmra.mrb[0].mxu0 %v2614
      %v2682 = vpop.f32.mrb[0].mxu0
      %v2683 = vadd.f32 %v2611, %v2682
      %v2684 = vpop.f32.mrb[0].mxu0
      %2685 = vdwg.mxu0
      %vm2686 = vcmask 123968
      %v2687 = vsel %vm2686, %v2683, -inf
      %2688 = vmax.xlane.f32.xlu0 %v2687
      %v2689 = vpop.xlane.xlu0 %2688
      %v2690 = vsub.f32 %v2683, %v2689
      %v2691 = vmul.f32 %v2690, 1.442695
      %v2692 = vpow.pop %v2691
      %2694 = vrot.lane.b32.xlu0 %v2692, 120
      %v2695 = vpop.permute.xlu0 %2694
      %vm2697 = vcmask 58368
      %v2698 = vsel %vm2697, %v2695, 0.0
      %2699 = vadd.xlane.f32.xlu0 %v2698
      %v2700 = vpop.xlane.xlu0 %2699
      %v2701 = vrcp.pop %v2700
      %v2702 = vmul.f32 %v2692, %v2701
      %v2703 = vsel %vm1121, %v2683, %v2702
      %vm2704 = vcmask 123904
      %2705 = vst.msk [vmem:[%s466] sm:$0x3] %vm2704, %v2703
      %p2706 = scmp.lt.s32.totalorder %s20, 3
      %s2707 = scalar_select %p2706, %s20, 3
      %s2708 = smul.addr %s2707, 2
      %s2709 = scalar_lea.vmem %s9, %s2708
      // Predicated region
      $region57: #{net_forward.1} parent=55 // pred_check
        %p2710 = pneg %p272
      $region58: #{net_forward.1} parent=55 // pred_check_branch
        %2712 = sbr.rel (%p2710) target = $region60
      $region59: #{net_forward.1} parent=55 // pred_region
        _
      $region60: #{net_forward.1} parent=55 // pred_fallthru
        _
    $region56: #{net_forward.1} parent=5 // pred_fallthru
      _
    %p2713 = scmp.le.s32.totalorder 2, %s15
    // Predicated region
    $region61: #{net_forward.1} parent=5 // pred_check
      %p2714 = pneg %p2713
    $region62: #{net_forward.1} parent=5 // pred_check_branch
      %2716 = sbr.rel (%p2714) target = $region64
    $region63: #{net_forward.1} parent=5 // pred_region
      %s2717 = ssub.s32 %s15, 2
      // Predicated region
      $region65: #{net_forward.1} parent=63 // pred_check
        %p2718 = pneg %p278
      $region66: #{net_forward.1} parent=63 // pred_check_branch
        %2720 = sbr.rel (%p2718) target = $region68
      $region67: #{net_forward.1} parent=63 // pred_region
        %p2721 = scmp.lt.s32.totalorder %s21, 3
        %s2722 = scalar_select %p2721, %s21, 3
        %s2723 = smul.addr %s2722, 2
        %s2724 = scalar_lea.vmem %s9, %s2723
      $region68: #{net_forward.1} parent=63 // pred_fallthru
        _
    $region64: #{net_forward.1} parent=5 // pred_fallthru
      _
  $region6: #{net_forward.1} parent=0 // loop_footer
    %s19 = sadd.s32 1, %s15
  $region7: #{net_forward.1} parent=0 // loop_footer_branch
    %14 = sbr.rel target = $region3
  $region8: #{net_forward.1} parent=0 // loop_exit
    _

</llo_original>
